<compile_context>
chip_gen: v7x
topology: tpu7x:2x2x1
jax: 0.10.0
libtpu: 0.0.40
codegen_flags: <defaults>
</compile_context>

<pallas_src>
import functools

import jax
import jax.numpy as jnp
from jax import lax
from jax.experimental import pallas as pl
from jax.experimental.pallas import tpu as pltpu

EPS = 1e-5            # F.layer_norm default eps
NEG_INF = -1e30       # large finite mask value (exp -> 0, never NaN)

_VMEM_LIMIT = None


def _vmem_limit_bytes():
    """Generation-aware scoped-VMEM limit (85% of capacity, capped at 100 MiB)."""
    global _VMEM_LIMIT
    if _VMEM_LIMIT is None:
        cap = 64 * 1024 * 1024                       # conservative (v7x per-TC)
        try:
            cap = int(pltpu.get_tpu_info().vmem_capacity_bytes)
        except Exception:
            pass
        _VMEM_LIMIT = min(cap * 85 // 100, 100 * 1024 * 1024)
    return _VMEM_LIMIT


# ----------------------------- in-kernel helpers -----------------------------
def _layernorm(x, gamma):
    mu = jnp.mean(x, axis=-1, keepdims=True)
    var = jnp.mean(jnp.square(x - mu), axis=-1, keepdims=True)
    return (x - mu) * lax.rsqrt(var + EPS) * gamma


def _swap_halves(t):
    # rotate_half with its sign pre-folded into the sin table (wrapper side):
    # rotate_half(t) * sin == _swap_halves(t) * sin_signed
    half = t.shape[-1] // 2
    return jnp.concatenate([t[:, half:], t[:, :half]], axis=-1)


# --------------------------- ParallelTransformerBlock ------------------------
def parallel_block_kernel(x_ref, gamma_ref, wq_ref, wk_ref, wv_ref, wffv_ref,
                          wffg_ref, wao_ref, wfo_ref, cos_ref, sin_ref, o_ref,
                          *, heads, dim_head):
    n = x_ref.shape[1]
    scale = dim_head ** -0.5

    x = x_ref[0].astype(jnp.float32)                  # (n, dim), f32 math
    xn = _layernorm(x, gamma_ref[...])
    xn_b = xn.astype(jnp.bfloat16)

    cos = cos_ref[...]                                # (n, dh)
    sin = sin_ref[...]                                # (n, dh), sign pre-folded

    # shared k / v projections (multi-query attention)
    k = jnp.dot(xn_b, wk_ref[...], preferred_element_type=jnp.float32)   # (n, dh)
    v = jnp.dot(xn_b, wv_ref[...], preferred_element_type=jnp.float32)   # (n, dh)
    k_rot = (k * cos + _swap_halves(k) * sin).astype(jnp.bfloat16)

    # per-head q projection + rotary: aligned (dim, dh) matmuls, no column
    # slicing, no scratch; rows are concatenated head-major (tile-aligned).
    q_rows = []
    for hh in range(heads):
        qh = jnp.dot(xn_b, wq_ref[hh], preferred_element_type=jnp.float32)
        qh = (qh * cos + _swap_halves(qh) * sin) * scale
        q_rows.append(qh.astype(jnp.bfloat16))
    qflat = jnp.concatenate(q_rows, axis=0)           # (heads*n, dh)

    # causal multi-query attention: ONE MXU matmul per stage for all heads
    sim = lax.dot_general(qflat, k_rot, (((1,), (1,)), ((), ())),
                          preferred_element_type=jnp.float32)            # (h*n, n)
    sim = sim.reshape(heads, n, n)                    # leading-dim split (free)
    qpos = lax.broadcasted_iota(jnp.int32, (n, n), 0)
    kpos = lax.broadcasted_iota(jnp.int32, (n, n), 1)
    sim = jnp.where((kpos > qpos)[None], NEG_INF, sim)   # (n,n) mask, bcast heads
    sim = sim - jnp.max(sim, axis=-1, keepdims=True)
    p = jnp.exp(sim)
    inv = pl.reciprocal(jnp.sum(p, axis=-1, keepdims=True), approx=True)
    attn = (p * inv).astype(jnp.bfloat16).reshape(heads * n, n)
    outf = jnp.dot(attn, v.astype(jnp.bfloat16),
                   preferred_element_type=jnp.float32)                   # (h*n, dh)

    # attn_out: per-head row blocks @ per-head weight slabs, accumulated in f32
    attn_out = None
    for hh in range(heads):
        o_h = outf[hh * n:(hh + 1) * n, :].astype(jnp.bfloat16)          # (n, dh)
        part = jnp.dot(o_h, wao_ref[hh], preferred_element_type=jnp.float32)
        attn_out = part if attn_out is None else attn_out + part

    # SwiGLU feed-forward (value / gate weights pre-split -> no column slicing)
    ff_v = jnp.dot(xn_b, wffv_ref[...], preferred_element_type=jnp.float32)
    ff_g = jnp.dot(xn_b, wffg_ref[...], preferred_element_type=jnp.float32)
    ff_act = (jax.nn.silu(ff_g) * ff_v).astype(jnp.bfloat16)
    ff_out = jnp.dot(ff_act, wfo_ref[...], preferred_element_type=jnp.float32)

    # parallel attn + ff, plus the Residual wrapper
    o_ref[0] = (attn_out + ff_out + x).astype(jnp.bfloat16)


def _block_cost_estimate(b, n, dim, heads, dim_head, ff_inner):
    attn_inner = heads * dim_head
    flops = b * (2 * n * dim * (attn_inner + 2 * dim_head + 2 * ff_inner)
                 + 4 * heads * n * n * dim_head
                 + 2 * n * attn_inner * dim
                 + 2 * n * ff_inner * dim)
    transcendentals = b * (heads * n * n + n * ff_inner + 2 * n)
    weight_bytes = 2 * (dim * (attn_inner + 2 * dim_head + 2 * ff_inner)
                        + attn_inner * dim + ff_inner * dim)
    bytes_accessed = 2 * b * n * dim * 2 + weight_bytes + 2 * n * dim_head * 4 + dim * 4
    return pl.CostEstimate(flops=int(flops), transcendentals=int(transcendentals),
                           bytes_accessed=int(bytes_accessed))


def run_parallel_block(x, layer, cos, sin, *, heads, dim_head, vmem_limit):
    b, n, dim = x.shape
    ff_inner = layer["w_ff_out"].shape[0]
    kernel = functools.partial(parallel_block_kernel, heads=heads,
                               dim_head=dim_head)

    def const_spec(shape):
        nd = len(shape)
        # constant block index across the grid -> single-buffered (no 2x VMEM)
        return pl.BlockSpec(shape, lambda i: (0,) * nd,
                            pipeline_mode=pl.Buffered(1))

    return pl.pallas_call(
        kernel,
        out_shape=jax.ShapeDtypeStruct((b, n, dim), jnp.bfloat16),
        grid=(b,),
        in_specs=[
            pl.BlockSpec((1, n, dim), lambda i: (i, 0, 0)),      # x (residual)
            const_spec((1, dim)),                                # gamma
            const_spec((heads, dim, dim_head)),                  # w_q (per head)
            const_spec((dim, dim_head)),                         # w_k
            const_spec((dim, dim_head)),                         # w_v
            const_spec((dim, ff_inner)),                         # w_ff value
            const_spec((dim, ff_inner)),                         # w_ff gate
            const_spec((heads, dim_head, dim)),                  # w_attn_out
            const_spec((ff_inner, dim)),                         # w_ff_out
            const_spec((n, dim_head)),                           # cos
            const_spec((n, dim_head)),                           # sin (signed)
        ],
        out_specs=pl.BlockSpec((1, n, dim), lambda i: (i, 0, 0)),
        input_output_aliases={0: 0},                             # residual in place
        cost_estimate=_block_cost_estimate(b, n, dim, heads, dim_head, ff_inner),
        compiler_params=pltpu.CompilerParams(
            dimension_semantics=("parallel",),
            vmem_limit_bytes=vmem_limit),
    )(x, layer["gamma"], layer["w_q"], layer["w_k"], layer["w_v"],
      layer["w_ff_v"], layer["w_ff_g"], layer["w_attn_out"], layer["w_ff_out"],
      cos, sin)


# -------------------------------- to_logits ----------------------------------
def to_logits_kernel(x_ref, gamma_ref, embt_ref, o_ref, xn_scr):
    # final layernorm computed once per batch element (vocab is the inner
    # "arbitrary" axis) and cached in VMEM -- not recomputed per vocab tile.
    @pl.when(pl.program_id(1) == 0)
    def _():
        x = x_ref[0].astype(jnp.float32)
        xn_scr[...] = _layernorm(x, gamma_ref[...]).astype(jnp.bfloat16)

    o_ref[0] = jnp.dot(xn_scr[...], embt_ref[...],
                       preferred_element_type=jnp.float32)


def _pick_vocab_tile(v_pad, n, dim, vmem_budget):
    # largest lane-aligned vocab tile whose pipeline footprint (double-buffered
    # emb tile + double-buffered f32 out tile + resident x / xn) fits VMEM with
    # headroom; generation-aware via the vmem budget (v7x 64 MiB vs 128 MiB).
    for tv in (2048, 1024, 512, 256, 128):
        if tv > v_pad or v_pad % tv:
            continue
        need = 2 * (dim * tv * 2 + n * tv * 4) + 2 * n * dim * 2
        if 2 * need <= vmem_budget:
            return tv
    return 128


def _logits_cost_estimate(b, n, dim, v_pad):
    return pl.CostEstimate(
        flops=int(2 * b * n * dim * v_pad),
        transcendentals=int(b * n),
        bytes_accessed=int(b * n * dim * 2 + dim * v_pad * 2 + b * n * v_pad * 4))


def run_to_logits(x, gamma, emb_t, *, vmem_limit):
    b, n, dim = x.shape
    v_pad = emb_t.shape[1]
    tv = _pick_vocab_tile(v_pad, n, dim, vmem_limit)
    return pl.pallas_call(
        to_logits_kernel,
        out_shape=jax.ShapeDtypeStruct((b, n, v_pad), jnp.float32),
        grid=(b, v_pad // tv),
        in_specs=[
            pl.BlockSpec((1, n, dim), lambda i, j: (i, 0, 0)),
            pl.BlockSpec((1, dim), lambda i, j: (0, 0),
                         pipeline_mode=pl.Buffered(1)),
            pl.BlockSpec((dim, tv), lambda i, j: (0, j)),        # vocab-tiled
        ],
        out_specs=pl.BlockSpec((1, n, tv), lambda i, j: (i, 0, j)),
        scratch_shapes=[pltpu.VMEM((n, dim), jnp.bfloat16)],     # cached norm(x)
        cost_estimate=_logits_cost_estimate(b, n, dim, v_pad),
        compiler_params=pltpu.CompilerParams(
            dimension_semantics=("parallel", "arbitrary"),
            vmem_limit_bytes=vmem_limit),
    )(x, gamma, emb_t)


# --------------------------------- glue --------------------------------------
def rotary_tables(n, dim_head):
    inv_freq = 1.0 / (10000.0 ** (jnp.arange(0, dim_head, 2,
                                              dtype=jnp.float32) / dim_head))
    freqs = jnp.arange(n, dtype=jnp.float32)[:, None] * inv_freq[None, :]
    cos = jnp.cos(jnp.concatenate([freqs, freqs], axis=-1))      # (n, dim_head)
    s = jnp.sin(freqs)
    # rotate_half sign folded into sin: rotate_half(t)*sin == swap_halves(t)*sin_signed
    sin_signed = jnp.concatenate([-s, s], axis=-1)               # (n, dim_head)
    return cos, sin_signed


def init_params(key, *, dim, num_tokens, depth, dim_head, heads, ff_mult):
    ff_inner = dim * ff_mult
    keys = jax.random.split(key, 1 + 7 * depth)
    token_emb = 0.02 * jax.random.normal(keys[0], (num_tokens, dim),
                                         dtype=jnp.float32)

    def init(k, shape):
        return (0.02 * jax.random.normal(k, shape, jnp.float32)
                ).astype(jnp.bfloat16)

    layers = []
    for i in range(depth):
        kq, kk, kv, kfv, kfg, kao, kfo = keys[1 + 7 * i: 8 + 7 * i]
        layers.append(dict(
            gamma=jnp.ones((1, dim), jnp.float32),
            w_q=init(kq, (heads, dim, dim_head)),       # per-head column blocks
            w_k=init(kk, (dim, dim_head)),
            w_v=init(kv, (dim, dim_head)),
            w_ff_v=init(kfv, (dim, ff_inner)),          # SwiGLU value half
            w_ff_g=init(kfg, (dim, ff_inner)),          # SwiGLU gate half
            w_attn_out=init(kao, (heads, dim_head, dim)),
            w_ff_out=init(kfo, (ff_inner, dim)),
        ))
    return dict(token_emb=token_emb, layers=layers,
                final_gamma=jnp.ones((1, dim), jnp.float32))


def flamingo_palm_forward(params, text, *, heads, dim_head):
    """Text-only forward (images=None, image_embeds=None)."""
    token_emb = params["token_emb"]                   # (num_tokens, dim) f32
    num_tokens, dim = token_emb.shape
    n = text.shape[1]
    vmem_limit = _vmem_limit_bytes()

    x = token_emb[text].astype(jnp.bfloat16)          # embedding gather (glue)
    cos, sin = rotary_tables(n, dim_head)
    for layer in params["layers"]:
        x = run_parallel_block(x, layer, cos, sin, heads=heads,
                               dim_head=dim_head, vmem_limit=vmem_limit)

    # tied weights; vocab padded to a 128 multiple for lane-dense logit stores
    v_pad = ((num_tokens + 127) // 128) * 128
    emb_t = token_emb.T.astype(jnp.bfloat16)
    if v_pad != num_tokens:
        emb_t = jnp.pad(emb_t, ((0, 0), (0, v_pad - num_tokens)))
    logits = run_to_logits(x, params["final_gamma"], emb_t,
                           vmem_limit=vmem_limit)
    return logits[..., :num_tokens]


# --------------------------------- main ---------------------------------------
if __name__ == "__main__":
    batch, seq = 2, 8
    dim, num_tokens, depth = 32, 64, 3
    dim_head, heads, ff_mult = 16, 2, 4

    key = jax.random.PRNGKey(0)
    k_params, k_text = jax.random.split(key)
    params = init_params(k_params, dim=dim, num_tokens=num_tokens, depth=depth,
                         dim_head=dim_head, heads=heads, ff_mult=ff_mult)
    text = jax.random.randint(k_text, (batch, seq), 0, num_tokens,
                              dtype=jnp.int32)

    fwd = jax.jit(functools.partial(flamingo_palm_forward, heads=heads,
                                    dim_head=dim_head))
    logits = fwd(params, text)
    logits = jax.block_until_ready(logits)

    assert logits.shape == (batch, seq, num_tokens)
    assert bool(jnp.all(jnp.isfinite(logits)))
    print("KERNEL_OK")
</pallas_src>

<mosaic_0001>
module attributes {stable_mosaic.version = 11 : i64} {
  func.func @to_logits_kernel(%arg0: i32, %arg1: i32, %arg2: memref<1x8x32xbf16, #tpu.memory_space<vmem>>, %arg3: memref<1x32xf32, #tpu.memory_space<vmem>>, %arg4: memref<32x128xbf16, #tpu.memory_space<vmem>>, %arg5: memref<1x8x128xf32, #tpu.memory_space<vmem>>, %arg6: memref<8x32xbf16, #tpu.memory_space<vmem>>) attributes {dimension_semantics = [#tpu.dimension_semantics<parallel>, #tpu.dimension_semantics<arbitrary>], iteration_bounds = array<i64: 2, 1>, scalar_prefetch = 0 : i64, scratch_operands = 1 : i64, tpu.core_type = #tpu.core_type<tc>, window_params = [{transform_indices = @transform_0, window_bounds = array<i64: 1, 8, 32>}, {pipeline_mode = #tpu.pipeline_mode<synchronous>, transform_indices = @transform_1, window_bounds = array<i64: 1, 32>}, {transform_indices = @transform_2, window_bounds = array<i64: 32, 128>}, {transform_indices = @transform_3, window_bounds = array<i64: 1, 8, 128>}]} {
    %c0_i32 = arith.constant 0 : i32
    %0 = arith.cmpi eq, %arg1, %c0_i32 : i32
    %1 = arith.extui %0 : i1 to i32
    %c0_i32_0 = arith.constant 0 : i32
    %2 = arith.cmpi ne, %1, %c0_i32_0 : i32
    scf.if %2 {
      %c0_7 = arith.constant 0 : index
      %c0_8 = arith.constant 0 : index
      %c0_9 = arith.constant 0 : index
      %9 = vector.load %arg2[%c0_7, %c0_8, %c0_9] : memref<1x8x32xbf16, #tpu.memory_space<vmem>>, vector<1x8x32xbf16>
      %10 = vector.shape_cast %9 : vector<1x8x32xbf16> to vector<8x32xbf16>
      %11 = arith.extf %10 : vector<8x32xbf16> to vector<8x32xf32>
      %c0_10 = arith.constant 0 : index
      %c0_11 = arith.constant 0 : index
      %12 = vector.load %arg3[%c0_10, %c0_11] : memref<1x32xf32, #tpu.memory_space<vmem>>, vector<1x32xf32>
      %cst_12 = arith.constant dense<0.000000e+00> : vector<8xf32>
      %13 = vector.multi_reduction <add>, %11, %cst_12 [1] : vector<8x32xf32> to vector<8xf32>
      %14 = vector.shape_cast %13 : vector<8xf32> to vector<8x1xf32>
      %cst_13 = arith.constant 3.200000e+01 : f32
      %15 = vector.broadcast %cst_13 : f32 to vector<8x1xf32>
      %16 = arith.divf %14, %15 : vector<8x1xf32>
      %17 = vector.broadcast %16 : vector<8x1xf32> to vector<8x32xf32>
      %18 = arith.subf %11, %17 : vector<8x32xf32>
      %19 = arith.mulf %18, %18 : vector<8x32xf32>
      %cst_14 = arith.constant dense<0.000000e+00> : vector<8xf32>
      %20 = vector.multi_reduction <add>, %19, %cst_14 [1] : vector<8x32xf32> to vector<8xf32>
      %21 = vector.shape_cast %20 : vector<8xf32> to vector<8x1xf32>
      %cst_15 = arith.constant 3.200000e+01 : f32
      %22 = vector.broadcast %cst_15 : f32 to vector<8x1xf32>
      %23 = arith.divf %21, %22 : vector<8x1xf32>
      %24 = vector.broadcast %16 : vector<8x1xf32> to vector<8x32xf32>
      %25 = arith.subf %11, %24 : vector<8x32xf32>
      %cst_16 = arith.constant 9.99999974E-6 : f32
      %26 = vector.broadcast %cst_16 : f32 to vector<8x1xf32>
      %27 = arith.addf %23, %26 : vector<8x1xf32>
      %28 = math.rsqrt %27 : vector<8x1xf32>
      %29 = vector.broadcast %28 : vector<8x1xf32> to vector<8x32xf32>
      %30 = arith.mulf %25, %29 : vector<8x32xf32>
      %31 = vector.broadcast %12 : vector<1x32xf32> to vector<8x32xf32>
      %32 = arith.mulf %30, %31 : vector<8x32xf32>
      %33 = arith.truncf %32 : vector<8x32xf32> to vector<8x32xbf16>
      %c0_17 = arith.constant 0 : index
      %c0_18 = arith.constant 0 : index
      %34 = vector.load %arg6[%c0_17, %c0_18] : memref<8x32xbf16, #tpu.memory_space<vmem>>, vector<8x32xbf16>
      tpu.vector_store %arg6[%c0_17, %c0_18], %33 {strides = array<i32>} : memref<8x32xbf16, #tpu.memory_space<vmem>>, vector<8x32xbf16>,
    } else {
    }
    %c0 = arith.constant 0 : index
    %c0_1 = arith.constant 0 : index
    %3 = vector.load %arg6[%c0, %c0_1] : memref<8x32xbf16, #tpu.memory_space<vmem>>, vector<8x32xbf16>
    %c0_2 = arith.constant 0 : index
    %c0_3 = arith.constant 0 : index
    %4 = vector.load %arg4[%c0_2, %c0_3] : memref<32x128xbf16, #tpu.memory_space<vmem>>, vector<32x128xbf16>
    %cst = arith.constant dense<0.000000e+00> : vector<8x128xf32>
    %5 = tpu.matmul %3, %4, %cst {dimension_numbers = #tpu.dot_dimension_numbers<[1], [0], [0], [1], [0, 0, 1, 1], [], []>} : vector<8x32xbf16>, vector<32x128xbf16>, vector<8x128xf32> -> vector<8x128xf32>
    %c0_4 = arith.constant 0 : index
    %c0_5 = arith.constant 0 : index
    %c0_6 = arith.constant 0 : index
    %6 = vector.load %arg5[%c0_4, %c0_5, %c0_6] : memref<1x8x128xf32, #tpu.memory_space<vmem>>, vector<1x8x128xf32>
    %7 = vector.shape_cast %6 : vector<1x8x128xf32> to vector<8x128xf32>
    %8 = vector.shape_cast %5 : vector<8x128xf32> to vector<1x8x128xf32>
    tpu.vector_store %arg5[%c0_4, %c0_5, %c0_6], %8 {strides = array<i32>} : memref<1x8x128xf32, #tpu.memory_space<vmem>>, vector<1x8x128xf32>,
    return
  }
  func.func @transform_0(%arg0: i32, %arg1: i32) -> (i32, i32, i32) {
    %c0_i32 = arith.constant 0 : i32
    %c0_i32_0 = arith.constant 0 : i32
    %c0_i32_1 = arith.constant 0 : i32
    return %arg0, %c0_i32, %c0_i32_0 : i32, i32, i32
  }
  func.func @transform_1(%arg0: i32, %arg1: i32) -> (i32, i32) {
    %c0_i32 = arith.constant 0 : i32
    %c0_i32_0 = arith.constant 0 : i32
    %c0_i32_1 = arith.constant 0 : i32
    return %c0_i32, %c0_i32_0 : i32, i32
  }
  func.func @transform_2(%arg0: i32, %arg1: i32) -> (i32, i32) {
    %c0_i32 = arith.constant 0 : i32
    %c0_i32_0 = arith.constant 0 : i32
    return %c0_i32, %arg1 : i32, i32
  }
  func.func @transform_3(%arg0: i32, %arg1: i32) -> (i32, i32, i32) {
    %c0_i32 = arith.constant 0 : i32
    %c0_i32_0 = arith.constant 0 : i32
    return %arg0, %c0_i32, %arg1 : i32, i32, i32
  }
}

module attributes {stable_mosaic.version = 11 : i64} {
  func.func @parallel_block_kernel(%arg0: i32, %arg1: memref<1x8x32xbf16, #tpu.memory_space<vmem>>, %arg2: memref<1x32xf32, #tpu.memory_space<vmem>>, %arg3: memref<2x32x16xbf16, #tpu.memory_space<vmem>>, %arg4: memref<32x16xbf16, #tpu.memory_space<vmem>>, %arg5: memref<32x16xbf16, #tpu.memory_space<vmem>>, %arg6: memref<32x128xbf16, #tpu.memory_space<vmem>>, %arg7: memref<32x128xbf16, #tpu.memory_space<vmem>>, %arg8: memref<2x16x32xbf16, #tpu.memory_space<vmem>>, %arg9: memref<128x32xbf16, #tpu.memory_space<vmem>>, %arg10: memref<8x16xf32, #tpu.memory_space<vmem>>, %arg11: memref<8x16xf32, #tpu.memory_space<vmem>>, %arg12: memref<1x8x32xbf16, #tpu.memory_space<vmem>>) attributes {dimension_semantics = [#tpu.dimension_semantics<parallel>], iteration_bounds = array<i64: 2>, scalar_prefetch = 0 : i64, scratch_operands = 0 : i64, tpu.core_type = #tpu.core_type<tc>, window_params = [{transform_indices = @transform_0, window_bounds = array<i64: 1, 8, 32>}, {pipeline_mode = #tpu.pipeline_mode<synchronous>, transform_indices = @transform_1, window_bounds = array<i64: 1, 32>}, {pipeline_mode = #tpu.pipeline_mode<synchronous>, transform_indices = @transform_2, window_bounds = array<i64: 2, 32, 16>}, {pipeline_mode = #tpu.pipeline_mode<synchronous>, transform_indices = @transform_3, window_bounds = array<i64: 32, 16>}, {pipeline_mode = #tpu.pipeline_mode<synchronous>, transform_indices = @transform_4, window_bounds = array<i64: 32, 16>}, {pipeline_mode = #tpu.pipeline_mode<synchronous>, transform_indices = @transform_5, window_bounds = array<i64: 32, 128>}, {pipeline_mode = #tpu.pipeline_mode<synchronous>, transform_indices = @transform_6, window_bounds = array<i64: 32, 128>}, {pipeline_mode = #tpu.pipeline_mode<synchronous>, transform_indices = @transform_7, window_bounds = array<i64: 2, 16, 32>}, {pipeline_mode = #tpu.pipeline_mode<synchronous>, transform_indices = @transform_8, window_bounds = array<i64: 128, 32>}, {pipeline_mode = #tpu.pipeline_mode<synchronous>, transform_indices = @transform_9, window_bounds = array<i64: 8, 16>}, {pipeline_mode = #tpu.pipeline_mode<synchronous>, transform_indices = @transform_10, window_bounds = array<i64: 8, 16>}, {transform_indices = @transform_11, window_bounds = array<i64: 1, 8, 32>}]} {
    %c0 = arith.constant 0 : index
    %c0_0 = arith.constant 0 : index
    %c0_1 = arith.constant 0 : index
    %0 = vector.load %arg1[%c0, %c0_0, %c0_1] : memref<1x8x32xbf16, #tpu.memory_space<vmem>>, vector<1x8x32xbf16>
    %1 = vector.shape_cast %0 : vector<1x8x32xbf16> to vector<8x32xbf16>
    %2 = arith.extf %1 : vector<8x32xbf16> to vector<8x32xf32>
    %c0_2 = arith.constant 0 : index
    %c0_3 = arith.constant 0 : index
    %3 = vector.load %arg2[%c0_2, %c0_3] : memref<1x32xf32, #tpu.memory_space<vmem>>, vector<1x32xf32>
    %cst = arith.constant dense<0.000000e+00> : vector<8xf32>
    %4 = vector.multi_reduction <add>, %2, %cst [1] : vector<8x32xf32> to vector<8xf32>
    %5 = vector.shape_cast %4 : vector<8xf32> to vector<8x1xf32>
    %cst_4 = arith.constant 3.200000e+01 : f32
    %6 = vector.broadcast %cst_4 : f32 to vector<8x1xf32>
    %7 = arith.divf %5, %6 : vector<8x1xf32>
    %8 = vector.broadcast %7 : vector<8x1xf32> to vector<8x32xf32>
    %9 = arith.subf %2, %8 : vector<8x32xf32>
    %10 = arith.mulf %9, %9 : vector<8x32xf32>
    %cst_5 = arith.constant dense<0.000000e+00> : vector<8xf32>
    %11 = vector.multi_reduction <add>, %10, %cst_5 [1] : vector<8x32xf32> to vector<8xf32>
    %12 = vector.shape_cast %11 : vector<8xf32> to vector<8x1xf32>
    %cst_6 = arith.constant 3.200000e+01 : f32
    %13 = vector.broadcast %cst_6 : f32 to vector<8x1xf32>
    %14 = arith.divf %12, %13 : vector<8x1xf32>
    %15 = vector.broadcast %7 : vector<8x1xf32> to vector<8x32xf32>
    %16 = arith.subf %2, %15 : vector<8x32xf32>
    %cst_7 = arith.constant 9.99999974E-6 : f32
    %17 = vector.broadcast %cst_7 : f32 to vector<8x1xf32>
    %18 = arith.addf %14, %17 : vector<8x1xf32>
    %19 = math.rsqrt %18 : vector<8x1xf32>
    %20 = vector.broadcast %19 : vector<8x1xf32> to vector<8x32xf32>
    %21 = arith.mulf %16, %20 : vector<8x32xf32>
    %22 = vector.broadcast %3 : vector<1x32xf32> to vector<8x32xf32>
    %23 = arith.mulf %21, %22 : vector<8x32xf32>
    %24 = arith.truncf %23 : vector<8x32xf32> to vector<8x32xbf16>
    %c0_8 = arith.constant 0 : index
    %c0_9 = arith.constant 0 : index
    %25 = vector.load %arg10[%c0_8, %c0_9] : memref<8x16xf32, #tpu.memory_space<vmem>>, vector<8x16xf32>
    %c0_10 = arith.constant 0 : index
    %c0_11 = arith.constant 0 : index
    %26 = vector.load %arg11[%c0_10, %c0_11] : memref<8x16xf32, #tpu.memory_space<vmem>>, vector<8x16xf32>
    %c0_12 = arith.constant 0 : index
    %c0_13 = arith.constant 0 : index
    %27 = vector.load %arg4[%c0_12, %c0_13] : memref<32x16xbf16, #tpu.memory_space<vmem>>, vector<32x16xbf16>
    %cst_14 = arith.constant dense<0.000000e+00> : vector<8x16xf32>
    %28 = tpu.matmul %24, %27, %cst_14 {dimension_numbers = #tpu.dot_dimension_numbers<[1], [0], [0], [1], [0, 0, 1, 1], [], []>} : vector<8x32xbf16>, vector<32x16xbf16>, vector<8x16xf32> -> vector<8x16xf32>
    %c0_15 = arith.constant 0 : index
    %c0_16 = arith.constant 0 : index
    %29 = vector.load %arg5[%c0_15, %c0_16] : memref<32x16xbf16, #tpu.memory_space<vmem>>, vector<32x16xbf16>
    %cst_17 = arith.constant dense<0.000000e+00> : vector<8x16xf32>
    %30 = tpu.matmul %24, %29, %cst_17 {dimension_numbers = #tpu.dot_dimension_numbers<[1], [0], [0], [1], [0, 0, 1, 1], [], []>} : vector<8x32xbf16>, vector<32x16xbf16>, vector<8x16xf32> -> vector<8x16xf32>
    %31 = arith.mulf %28, %25 : vector<8x16xf32>
    %32 = vector.extract_strided_slice %28 {offsets = [0, 8], sizes = [8, 8], strides = [1, 1]} : vector<8x16xf32> to vector<8x8xf32>
    %33 = vector.extract_strided_slice %28 {offsets = [0, 0], sizes = [8, 8], strides = [1, 1]} : vector<8x16xf32> to vector<8x8xf32>
    %34 = tpu.concatenate %32, %33 in 1 : vector<8x8xf32>, vector<8x8xf32> -> vector<8x16xf32>
    %35 = arith.mulf %34, %26 : vector<8x16xf32>
    %36 = arith.addf %31, %35 : vector<8x16xf32>
    %37 = arith.truncf %36 : vector<8x16xf32> to vector<8x16xbf16>
    %c0_18 = arith.constant 0 : index
    %c0_19 = arith.constant 0 : index
    %c0_20 = arith.constant 0 : index
    %38 = vector.load %arg3[%c0_18, %c0_19, %c0_20] : memref<2x32x16xbf16, #tpu.memory_space<vmem>>, vector<1x32x16xbf16>
    %39 = vector.shape_cast %38 : vector<1x32x16xbf16> to vector<32x16xbf16>
    %cst_21 = arith.constant dense<0.000000e+00> : vector<8x16xf32>
    %40 = tpu.matmul %24, %39, %cst_21 {dimension_numbers = #tpu.dot_dimension_numbers<[1], [0], [0], [1], [0, 0, 1, 1], [], []>} : vector<8x32xbf16>, vector<32x16xbf16>, vector<8x16xf32> -> vector<8x16xf32>
    %41 = arith.mulf %40, %25 : vector<8x16xf32>
    %42 = vector.extract_strided_slice %40 {offsets = [0, 8], sizes = [8, 8], strides = [1, 1]} : vector<8x16xf32> to vector<8x8xf32>
    %43 = vector.extract_strided_slice %40 {offsets = [0, 0], sizes = [8, 8], strides = [1, 1]} : vector<8x16xf32> to vector<8x8xf32>
    %44 = tpu.concatenate %42, %43 in 1 : vector<8x8xf32>, vector<8x8xf32> -> vector<8x16xf32>
    %45 = arith.mulf %44, %26 : vector<8x16xf32>
    %46 = arith.addf %41, %45 : vector<8x16xf32>
    %cst_22 = arith.constant 2.500000e-01 : f32
    %47 = vector.broadcast %cst_22 : f32 to vector<8x16xf32>
    %48 = arith.mulf %46, %47 : vector<8x16xf32>
    %49 = arith.truncf %48 : vector<8x16xf32> to vector<8x16xbf16>
    %c1 = arith.constant 1 : index
    %c0_23 = arith.constant 0 : index
    %c0_24 = arith.constant 0 : index
    %50 = vector.load %arg3[%c1, %c0_23, %c0_24] : memref<2x32x16xbf16, #tpu.memory_space<vmem>>, vector<1x32x16xbf16>
    %51 = vector.shape_cast %50 : vector<1x32x16xbf16> to vector<32x16xbf16>
    %cst_25 = arith.constant dense<0.000000e+00> : vector<8x16xf32>
    %52 = tpu.matmul %24, %51, %cst_25 {dimension_numbers = #tpu.dot_dimension_numbers<[1], [0], [0], [1], [0, 0, 1, 1], [], []>} : vector<8x32xbf16>, vector<32x16xbf16>, vector<8x16xf32> -> vector<8x16xf32>
    %53 = arith.mulf %52, %25 : vector<8x16xf32>
    %54 = vector.extract_strided_slice %52 {offsets = [0, 8], sizes = [8, 8], strides = [1, 1]} : vector<8x16xf32> to vector<8x8xf32>
    %55 = vector.extract_strided_slice %52 {offsets = [0, 0], sizes = [8, 8], strides = [1, 1]} : vector<8x16xf32> to vector<8x8xf32>
    %56 = tpu.concatenate %54, %55 in 1 : vector<8x8xf32>, vector<8x8xf32> -> vector<8x16xf32>
    %57 = arith.mulf %56, %26 : vector<8x16xf32>
    %58 = arith.addf %53, %57 : vector<8x16xf32>
    %cst_26 = arith.constant 2.500000e-01 : f32
    %59 = vector.broadcast %cst_26 : f32 to vector<8x16xf32>
    %60 = arith.mulf %58, %59 : vector<8x16xf32>
    %61 = arith.truncf %60 : vector<8x16xf32> to vector<8x16xbf16>
    %62 = tpu.concatenate %49, %61 in 0 : vector<8x16xbf16>, vector<8x16xbf16> -> vector<16x16xbf16>
    %cst_27 = arith.constant dense<0.000000e+00> : vector<16x8xf32>
    %63 = tpu.matmul %62, %37, %cst_27 {dimension_numbers = #tpu.dot_dimension_numbers<[1], [1], [0], [0], [0, 0, 1, 0], [], []>} : vector<16x16xbf16>, vector<8x16xbf16>, vector<16x8xf32> -> vector<16x8xf32>
    %64 = vector.shape_cast %63 : vector<16x8xf32> to vector<2x8x8xf32>
    %65 = tpu.iota {dimensions = array<i32: 0>} : vector<8x8xi32>
    %66 = tpu.iota {dimensions = array<i32: 1>} : vector<8x8xi32>
    %67 = arith.cmpi sgt, %66, %65 : vector<8x8xi32>
    %68 = vector.shape_cast %67 : vector<8x8xi1> to vector<1x8x8xi1>
    %cst_28 = arith.constant -1.000000e+30 : f32
    %69 = vector.shape_cast %68 : vector<1x8x8xi1> to vector<1x8x8xi1>
    %70 = vector.broadcast %69 : vector<1x8x8xi1> to vector<2x8x8xi1>
    %71 = vector.broadcast %cst_28 : f32 to vector<2x8x8xf32>
    %72 = arith.select %70, %71, %64 : vector<2x8x8xi1>, vector<2x8x8xf32>
    %cst_29 = arith.constant dense<0xFF800000> : vector<2x8xf32>
    %73 = vector.multi_reduction <maximumf>, %72, %cst_29 [2] : vector<2x8x8xf32> to vector<2x8xf32>
    %74 = vector.shape_cast %73 : vector<2x8xf32> to vector<2x8x1xf32>
    %75 = vector.broadcast %74 : vector<2x8x1xf32> to vector<2x8x8xf32>
    %76 = arith.subf %72, %75 : vector<2x8x8xf32>
    %77 = math.exp %76 : vector<2x8x8xf32>
    %cst_30 = arith.constant dense<0.000000e+00> : vector<2x8xf32>
    %78 = vector.multi_reduction <add>, %77, %cst_30 [2] : vector<2x8x8xf32> to vector<2x8xf32>
    %79 = vector.shape_cast %78 : vector<2x8xf32> to vector<2x8x1xf32>
    %80 = tpu.reciprocal %79 {approx = true} : vector<2x8x1xf32> -> vector<2x8x1xf32>
    %81 = vector.broadcast %80 : vector<2x8x1xf32> to vector<2x8x8xf32>
    %82 = arith.mulf %77, %81 : vector<2x8x8xf32>
    %83 = arith.truncf %82 : vector<2x8x8xf32> to vector<2x8x8xbf16>
    %84 = vector.shape_cast %83 : vector<2x8x8xbf16> to vector<16x8xbf16>
    %85 = arith.truncf %30 : vector<8x16xf32> to vector<8x16xbf16>
    %cst_31 = arith.constant dense<0.000000e+00> : vector<16x16xf32>
    %86 = tpu.matmul %84, %85, %cst_31 {dimension_numbers = #tpu.dot_dimension_numbers<[1], [0], [0], [1], [0, 0, 1, 1], [], []>} : vector<16x8xbf16>, vector<8x16xbf16>, vector<16x16xf32> -> vector<16x16xf32>
    %87 = vector.extract_strided_slice %86 {offsets = [0, 0], sizes = [8, 16], strides = [1, 1]} : vector<16x16xf32> to vector<8x16xf32>
    %88 = arith.truncf %87 : vector<8x16xf32> to vector<8x16xbf16>
    %c0_32 = arith.constant 0 : index
    %c0_33 = arith.constant 0 : index
    %c0_34 = arith.constant 0 : index
    %89 = vector.load %arg8[%c0_32, %c0_33, %c0_34] : memref<2x16x32xbf16, #tpu.memory_space<vmem>>, vector<1x16x32xbf16>
    %90 = vector.shape_cast %89 : vector<1x16x32xbf16> to vector<16x32xbf16>
    %cst_35 = arith.constant dense<0.000000e+00> : vector<8x32xf32>
    %91 = tpu.matmul %88, %90, %cst_35 {dimension_numbers = #tpu.dot_dimension_numbers<[1], [0], [0], [1], [0, 0, 1, 1], [], []>} : vector<8x16xbf16>, vector<16x32xbf16>, vector<8x32xf32> -> vector<8x32xf32>
    %92 = vector.extract_strided_slice %86 {offsets = [8, 0], sizes = [8, 16], strides = [1, 1]} : vector<16x16xf32> to vector<8x16xf32>
    %93 = arith.truncf %92 : vector<8x16xf32> to vector<8x16xbf16>
    %c1_36 = arith.constant 1 : index
    %c0_37 = arith.constant 0 : index
    %c0_38 = arith.constant 0 : index
    %94 = vector.load %arg8[%c1_36, %c0_37, %c0_38] : memref<2x16x32xbf16, #tpu.memory_space<vmem>>, vector<1x16x32xbf16>
    %95 = vector.shape_cast %94 : vector<1x16x32xbf16> to vector<16x32xbf16>
    %cst_39 = arith.constant dense<0.000000e+00> : vector<8x32xf32>
    %96 = tpu.matmul %93, %95, %cst_39 {dimension_numbers = #tpu.dot_dimension_numbers<[1], [0], [0], [1], [0, 0, 1, 1], [], []>} : vector<8x16xbf16>, vector<16x32xbf16>, vector<8x32xf32> -> vector<8x32xf32>
    %97 = arith.addf %91, %96 : vector<8x32xf32>
    %c0_40 = arith.constant 0 : index
    %c0_41 = arith.constant 0 : index
    %98 = vector.load %arg6[%c0_40, %c0_41] : memref<32x128xbf16, #tpu.memory_space<vmem>>, vector<32x128xbf16>
    %cst_42 = arith.constant dense<0.000000e+00> : vector<8x128xf32>
    %99 = tpu.matmul %24, %98, %cst_42 {dimension_numbers = #tpu.dot_dimension_numbers<[1], [0], [0], [1], [0, 0, 1, 1], [], []>} : vector<8x32xbf16>, vector<32x128xbf16>, vector<8x128xf32> -> vector<8x128xf32>
    %c0_43 = arith.constant 0 : index
    %c0_44 = arith.constant 0 : index
    %100 = vector.load %arg7[%c0_43, %c0_44] : memref<32x128xbf16, #tpu.memory_space<vmem>>, vector<32x128xbf16>
    %cst_45 = arith.constant dense<0.000000e+00> : vector<8x128xf32>
    %101 = tpu.matmul %24, %100, %cst_45 {dimension_numbers = #tpu.dot_dimension_numbers<[1], [0], [0], [1], [0, 0, 1, 1], [], []>} : vector<8x32xbf16>, vector<32x128xbf16>, vector<8x128xf32> -> vector<8x128xf32>
    %102 = arith.negf %101 : vector<8x128xf32>
    %103 = math.exp %102 : vector<8x128xf32>
    %cst_46 = arith.constant 1.000000e+00 : f32
    %104 = vector.broadcast %cst_46 : f32 to vector<8x128xf32>
    %105 = arith.addf %104, %103 : vector<8x128xf32>
    %106 = arith.divf %104, %105 : vector<8x128xf32>
    %107 = arith.mulf %101, %106 : vector<8x128xf32>
    %108 = arith.mulf %107, %99 : vector<8x128xf32>
    %109 = arith.truncf %108 : vector<8x128xf32> to vector<8x128xbf16>
    %c0_47 = arith.constant 0 : index
    %c0_48 = arith.constant 0 : index
    %110 = vector.load %arg9[%c0_47, %c0_48] : memref<128x32xbf16, #tpu.memory_space<vmem>>, vector<128x32xbf16>
    %cst_49 = arith.constant dense<0.000000e+00> : vector<8x32xf32>
    %111 = tpu.matmul %109, %110, %cst_49 {dimension_numbers = #tpu.dot_dimension_numbers<[1], [0], [0], [1], [0, 0, 1, 1], [], []>} : vector<8x128xbf16>, vector<128x32xbf16>, vector<8x32xf32> -> vector<8x32xf32>
    %112 = arith.addf %97, %111 : vector<8x32xf32>
    %113 = arith.addf %112, %2 : vector<8x32xf32>
    %114 = arith.truncf %113 : vector<8x32xf32> to vector<8x32xbf16>
    %c0_50 = arith.constant 0 : index
    %c0_51 = arith.constant 0 : index
    %c0_52 = arith.constant 0 : index
    %115 = vector.load %arg12[%c0_50, %c0_51, %c0_52] : memref<1x8x32xbf16, #tpu.memory_space<vmem>>, vector<1x8x32xbf16>
    %116 = vector.shape_cast %115 : vector<1x8x32xbf16> to vector<8x32xbf16>
    %117 = vector.shape_cast %114 : vector<8x32xbf16> to vector<1x8x32xbf16>
    tpu.vector_store %arg12[%c0_50, %c0_51, %c0_52], %117 {strides = array<i32>} : memref<1x8x32xbf16, #tpu.memory_space<vmem>>, vector<1x8x32xbf16>,
    return
  }
  func.func @transform_0(%arg0: i32) -> (i32, i32, i32) {
    %c0_i32 = arith.constant 0 : i32
    %c0_i32_0 = arith.constant 0 : i32
    %c0_i32_1 = arith.constant 0 : i32
    return %arg0, %c0_i32, %c0_i32_0 : i32, i32, i32
  }
  func.func @transform_1(%arg0: i32) -> (i32, i32) {
    %c0_i32 = arith.constant 0 : i32
    %c0_i32_0 = arith.constant 0 : i32
    %c0_i32_1 = arith.constant 0 : i32
    return %c0_i32, %c0_i32_0 : i32, i32
  }
  func.func @transform_2(%arg0: i32) -> (i32, i32, i32) {
    %c0_i32 = arith.constant 0 : i32
    %c0_i32_0 = arith.constant 0 : i32
    %c0_i32_1 = arith.constant 0 : i32
    %c0_i32_2 = arith.constant 0 : i32
    return %c0_i32, %c0_i32_0, %c0_i32_1 : i32, i32, i32
  }
  func.func @transform_3(%arg0: i32) -> (i32, i32) {
    %c0_i32 = arith.constant 0 : i32
    %c0_i32_0 = arith.constant 0 : i32
    %c0_i32_1 = arith.constant 0 : i32
    return %c0_i32, %c0_i32_0 : i32, i32
  }
  func.func @transform_4(%arg0: i32) -> (i32, i32) {
    %c0_i32 = arith.constant 0 : i32
    %c0_i32_0 = arith.constant 0 : i32
    %c0_i32_1 = arith.constant 0 : i32
    return %c0_i32, %c0_i32_0 : i32, i32
  }
  func.func @transform_5(%arg0: i32) -> (i32, i32) {
    %c0_i32 = arith.constant 0 : i32
    %c0_i32_0 = arith.constant 0 : i32
    %c0_i32_1 = arith.constant 0 : i32
    return %c0_i32, %c0_i32_0 : i32, i32
  }
  func.func @transform_6(%arg0: i32) -> (i32, i32) {
    %c0_i32 = arith.constant 0 : i32
    %c0_i32_0 = arith.constant 0 : i32
    %c0_i32_1 = arith.constant 0 : i32
    return %c0_i32, %c0_i32_0 : i32, i32
  }
  func.func @transform_7(%arg0: i32) -> (i32, i32, i32) {
    %c0_i32 = arith.constant 0 : i32
    %c0_i32_0 = arith.constant 0 : i32
    %c0_i32_1 = arith.constant 0 : i32
    %c0_i32_2 = arith.constant 0 : i32
    return %c0_i32, %c0_i32_0, %c0_i32_1 : i32, i32, i32
  }
  func.func @transform_8(%arg0: i32) -> (i32, i32) {
    %c0_i32 = arith.constant 0 : i32
    %c0_i32_0 = arith.constant 0 : i32
    %c0_i32_1 = arith.constant 0 : i32
    return %c0_i32, %c0_i32_0 : i32, i32
  }
  func.func @transform_9(%arg0: i32) -> (i32, i32) {
    %c0_i32 = arith.constant 0 : i32
    %c0_i32_0 = arith.constant 0 : i32
    %c0_i32_1 = arith.constant 0 : i32
    return %c0_i32, %c0_i32_0 : i32, i32
  }
  func.func @transform_10(%arg0: i32) -> (i32, i32) {
    %c0_i32 = arith.constant 0 : i32
    %c0_i32_0 = arith.constant 0 : i32
    %c0_i32_1 = arith.constant 0 : i32
    return %c0_i32, %c0_i32_0 : i32, i32
  }
  func.func @transform_11(%arg0: i32) -> (i32, i32, i32) {
    %c0_i32 = arith.constant 0 : i32
    %c0_i32_0 = arith.constant 0 : i32
    %c0_i32_1 = arith.constant 0 : i32
    return %arg0, %c0_i32, %c0_i32_0 : i32, i32, i32
  }
}

</mosaic_0001>

<llo_original>
// kernel: flamingo_palm_forward.7
$region0: #{flamingo_palm_forward.7}
  #allocation0 [shape = 'u32[]', space=smem, size = 0x4, offset = 0x4, fixed_abs, tag = 'smem constant byte address 0x4 - core index']
  #allocation1 [shape = 'u32[144,128]{1,0:T(1,128)}', space=vmem, size = 0x12000, scoped, tag = 'internal scratch']
  #allocation2 [shape = 'bf16[8,32]{1,0:T(8,128)(2,1)}', space=vmem, size = 0x800, scoped, tag = 'scratch operand']
  %s0 = inlined_call_operand.vmem [shape: bf16[2,8,32], index: 0, kind: input, shape index: {}]
  %s1 = inlined_call_operand.vmem [shape: f32[1,32], index: 1, kind: input, shape index: {}]
  %s2 = inlined_call_operand.vmem [shape: bf16[32,128], index: 2, kind: input, shape index: {}]
  %s3 = inlined_call_operand.hbm [shape: f32[2,8,128], index: 3, kind: output, shape index: {}]
  %s4 = sld [smem:[#allocation0]]
  $region49: #{flamingo_palm_forward.7} parent=0
    _
  %s6 = ssub.s32 1, %s4
  %s7 = scalar_select 0, %s6, %s4
  $region1: #{flamingo_palm_forward.7} parent=0
    #allocation3 [shape = 'u8[8192]{0}', space=vmem, size = 0x2000, scoped, tag = 'output window, operand 0']
    #allocation4 [shape = 's32[2]{0}', space=sflag, size = 0x8, scoped, tag = 'scoped memory for flamingo_palm_forward.7']
    %8 = vsyncpa [#allocation4], 0
    %s9 = scalar_lea.sflag [#allocation4], 1
    %10 = vsyncpa %s9, 0
    loop: start=0, step=1, limit=4
    $region2: #{flamingo_palm_forward.7} parent=1 // loop_pre_header
      _
    $region3: #{flamingo_palm_forward.7} parent=1 // loop_header
      %s12 = sphi 0, %s16
      %p13 = scmp.ge.s32.totalorder %s12, 4
      %s19 = sphi 0, %s31
      %s20 = sphi 0, %s27
      %s21 = sphi 0, %s19
      %s22 = sphi 0, %s20
      %s23 = sphi 0, %s21
      %s24 = sphi 0, %s22
      %s34 = sphi 0, %s36
      %s37 = sphi 0, %s34
      %s38 = sphi 0, %s37
      %s54 = sphi 0, %s38
      %s58 = sphi 0, %s58
      %s60 = sphi 0, %s58
      %s61 = sphi 0, %s60
      %s75 = sphi 0, %s61
      %s81 = sphi 0, %s83
      %s84 = sphi 0, %s81
      %s85 = sphi 0, %s84
      %s101 = sphi 0, %s85
      %s109 = sphi 0, %s111
      %s112 = sphi 0, %s109
      %s113 = sphi 0, %s112
      %s129 = sphi 0, %s113
    $region4: #{flamingo_palm_forward.7} parent=1 // loop_header_branch
      %15 = sbr.rel (%p13) target = $region8
    $region5: #{flamingo_palm_forward.7} parent=1 // loop_body
      %s17 = ssub.s32 %s12, 1
      %s18 = ssub.s32 %s12, 2
      %s25 = sadd.s32 1, %s20
      %p26 = scmp.ge.s32.totalorder %s25, 1
      %s27 = scalar_select %p26, 0, %s25
      %s28 = sadd.s32 1, %s19
      %s29 = scalar_select %p26, %s28, %s19
      %p30 = scmp.ge.s32.totalorder %s29, 2
      %s31 = scalar_select %p30, 0, %s29
      %s32 = ssub.s32 %s19, %s31
      %p33 = scmp.eq.s32.totalorder %s32, 0
      %s35 = sadd.s32 %s34, 1
      %s36 = scalar_select %p33, %s34, %s35
      %p39 = pneg %p33
      %p40 = scmp.eq.s32.totalorder %s12, 1
      %p41 = por %p39, %p40
      %p42 = scmp.ne.s32.totalorder %s34, %s37
      %p43 = scmp.eq.s32.totalorder %s12, 0
      %p44 = por %p42, %p43
      %p45 = scmp.ne.s32.totalorder %s34, %s37
      %p46 = scmp.eq.s32.totalorder %s17, 1
      %p47 = por %p45, %p46
      %p48 = scmp.ne.s32.totalorder %s37, %s38
      %p49 = scmp.eq.s32.totalorder %s17, 0
      %p50 = por %p48, %p49
      %p51 = scmp.ne.s32.totalorder %s37, %s38
      %p52 = scmp.eq.s32.totalorder %s18, 1
      %p53 = por %p51, %p52
      %p55 = scmp.ne.s32.totalorder %s38, %s54
      %p56 = scmp.eq.s32.totalorder %s18, 0
      %p57 = por %p55, %p56
      %s59 = sadd.s32 %s58, 1
      %p62 = scmp.eq.s32.totalorder %s12, 1
      %p63 = scmp.ne.s32.totalorder %s58, %s60
      %p64 = scmp.eq.s32.totalorder %s12, 0
      %p65 = por %p63, %p64
      %p66 = scmp.ne.s32.totalorder %s58, %s60
      %p67 = scmp.eq.s32.totalorder %s17, 1
      %p68 = por %p66, %p67
      %p69 = scmp.ne.s32.totalorder %s60, %s61
      %p70 = scmp.eq.s32.totalorder %s17, 0
      %p71 = por %p69, %p70
      %p72 = scmp.ne.s32.totalorder %s60, %s61
      %p73 = scmp.eq.s32.totalorder %s18, 1
      %p74 = por %p72, %p73
      %p76 = scmp.ne.s32.totalorder %s61, %s75
      %p77 = scmp.eq.s32.totalorder %s18, 0
      %p78 = por %p76, %p77
      %s79 = ssub.s32 %s20, %s27
      %p80 = scmp.eq.s32.totalorder %s79, 0
      %s82 = sadd.s32 %s81, 1
      %s83 = scalar_select %p80, %s81, %s82
      %p86 = pneg %p80
      %p87 = scmp.eq.s32.totalorder %s12, 1
      %p88 = por %p86, %p87
      %p89 = scmp.ne.s32.totalorder %s81, %s84
      %p90 = scmp.eq.s32.totalorder %s12, 0
      %p91 = por %p89, %p90
      %p92 = scmp.ne.s32.totalorder %s81, %s84
      %p93 = scmp.eq.s32.totalorder %s17, 1
      %p94 = por %p92, %p93
      %p95 = scmp.ne.s32.totalorder %s84, %s85
      %p96 = scmp.eq.s32.totalorder %s17, 0
      %p97 = por %p95, %p96
      %p98 = scmp.ne.s32.totalorder %s84, %s85
      %p99 = scmp.eq.s32.totalorder %s18, 1
      %p100 = por %p98, %p99
      %p102 = scmp.ne.s32.totalorder %s85, %s101
      %p103 = scmp.eq.s32.totalorder %s18, 0
      %p104 = por %p102, %p103
      %s105 = ssub.s32 %s19, %s31
      %s106 = ssub.s32 %s20, %s27
      %s107 = sor.u32 %s105, %s106
      %p108 = scmp.eq.s32.totalorder %s107, 0
      %s110 = sadd.s32 %s109, 1
      %s111 = scalar_select %p108, %s109, %s110
      %p114 = pneg %p108
      %p115 = scmp.eq.s32.totalorder %s12, 1
      %p116 = por %p114, %p115
      %p117 = scmp.ne.s32.totalorder %s109, %s112
      %p118 = scmp.eq.s32.totalorder %s12, 0
      %p119 = por %p117, %p118
      %p120 = scmp.ne.s32.totalorder %s109, %s112
      %p121 = scmp.eq.s32.totalorder %s17, 1
      %p122 = por %p120, %p121
      %p123 = scmp.ne.s32.totalorder %s112, %s113
      %p124 = scmp.eq.s32.totalorder %s17, 0
      %p125 = por %p123, %p124
      %p126 = scmp.ne.s32.totalorder %s112, %s113
      %p127 = scmp.eq.s32.totalorder %s18, 1
      %p128 = por %p126, %p127
      %p130 = scmp.ne.s32.totalorder %s113, %s129
      %p131 = scmp.eq.s32.totalorder %s18, 0
      %p132 = por %p130, %p131
      %p133 = scmp.le.s32.totalorder 1, %s12
      %p134 = scmp.lt.s32.totalorder %s12, 3
      %p135 = pnand %p133, %p134
      %p136 = pneg %p135
      // Predicated region
      $region9: #{flamingo_palm_forward.7} parent=5 // pred_check
        _
      $region10: #{flamingo_palm_forward.7} parent=5 // pred_check_branch
        %138 = sbr.rel (%p135) target = $region12
      $region11: #{flamingo_palm_forward.7} parent=5 // pred_region
        %s139 = ssub.s32 %s12, 1
        // Predicated region
        $region13: #{flamingo_palm_forward.7} parent=11 // pred_check
          %p140 = pneg %p71
        $region14: #{flamingo_palm_forward.7} parent=11 // pred_check_branch
          %142 = sbr.rel (%p140) target = $region16
        $region15: #{flamingo_palm_forward.7} parent=11 // pred_region
          _
        $region16: #{flamingo_palm_forward.7} parent=11 // pred_fallthru
          _
        // Predicated region
        $region17: #{flamingo_palm_forward.7} parent=11 // pred_check
          %p143 = pneg %p97
        $region18: #{flamingo_palm_forward.7} parent=11 // pred_check_branch
          %145 = sbr.rel (%p143) target = $region20
        $region19: #{flamingo_palm_forward.7} parent=11 // pred_region
          %p146 = scmp.lt.s32.totalorder %s22, 0
          %s147 = scalar_select %p146, %s22, 0
          %s148 = smul.addr %s147, 4
          %s149 = scalar_lea.vmem %s2, %s148
        $region20: #{flamingo_palm_forward.7} parent=11 // pred_fallthru
          _
      $region12: #{flamingo_palm_forward.7} parent=5 // pred_fallthru
        _
      %p150 = scmp.lt.s32.totalorder %s12, 2
      // Predicated region
      $region21: #{flamingo_palm_forward.7} parent=5 // pred_check
        %p151 = pneg %p150
      $region22: #{flamingo_palm_forward.7} parent=5 // pred_check_branch
        %153 = sbr.rel (%p151) target = $region24
      $region23: #{flamingo_palm_forward.7} parent=5 // pred_region
        // Predicated region
        $region25: #{flamingo_palm_forward.7} parent=23 // pred_check
          %p154 = pneg %p44
        $region26: #{flamingo_palm_forward.7} parent=23 // pred_check_branch
          %156 = sbr.rel (%p154) target = $region28
        $region27: #{flamingo_palm_forward.7} parent=23 // pred_region
          %p157 = scmp.lt.s32.totalorder %s19, 1
          %s158 = scalar_select %p157, %s19, 1
          %s159 = smul.addr %s158, 4
          %s160 = scalar_lea.vmem %s0, %s159
        $region28: #{flamingo_palm_forward.7} parent=23 // pred_fallthru
          _
      $region24: #{flamingo_palm_forward.7} parent=5 // pred_fallthru
        _
      %p161 = scmp.le.s32.totalorder 1, %s12
      %p162 = scmp.lt.s32.totalorder %s12, 3
      %p163 = pnand %p161, %p162
      %p164 = pneg %p163
      // Predicated region
      $region29: #{flamingo_palm_forward.7} parent=5 // pred_check
        _
      $region30: #{flamingo_palm_forward.7} parent=5 // pred_check_branch
        %166 = sbr.rel (%p163) target = $region32
      $region31: #{flamingo_palm_forward.7} parent=5 // pred_region
        %s167 = ssub.s32 %s12, 1
        %p168 = scmp.lt.s32.totalorder %s21, 1
        %s169 = scalar_select %p168, %s21, 1
        %s170 = smul.addr %s169, 4
        %s171 = scalar_lea.vmem %s0, %s170
        %p172 = pneg %p50
        %p173 = pneg %p47
        %p174 = pneg %p71
        %p175 = pneg %p68
        %p176 = scmp.lt.s32.totalorder %s22, 0
        %s177 = scalar_select %p176, %s22, 0
        %s178 = smul.addr %s177, 4
        %s179 = scalar_lea.vmem %s2, %s178
        %p180 = pneg %p97
        %p181 = pneg %p94
        %p182 = pneg %p125
        %p183 = pneg %p122
        %s184 = sand.u32 %s112, 1
        %s185 = scalar_lea.sflag [#allocation4], %s184
        %s186 = sand.u32 %s112, 1
        %s187 = smul.addr %s186, 8
        %s188 = scalar_lea.vmem [#allocation3], %s187
        %p189 = scmp.lt.s32.totalorder %s21, 1
        %s190 = scalar_select %p189, %s21, 1
        %s191 = smul.addr %s190, 4
        %s192 = scalar_lea.vmem %s0, %s191
        %p193 = scmp.lt.s32.totalorder %s22, 0
        %s194 = scalar_select %p193, %s22, 0
        %s195 = smul.addr %s194, 4
        %s196 = scalar_lea.vmem %s2, %s195
        %p198 = scmp.eq.s32.totalorder %s22, 0
        // Predicated region
        $region33: #{flamingo_palm_forward.7} parent=31 // pred_check
          %p199 = pneg %p198
        $region34: #{flamingo_palm_forward.7} parent=31 // pred_check_branch
          %201 = sbr.rel (%p199) target = $region36
        $region35: #{flamingo_palm_forward.7} parent=31 // pred_region
          %v202 = vld [vmem:[%s192] sm:$0xf]
          %v203 = vunpack.c.l.bf16 %v202
          %v204 = vld [vmem:[%s1] sm:$0x1]
          %vm205 = vcmask 261120
          %v206 = vsel %vm205, %v203, 0.0
          %207 = vadd.xlane.f32.xlu0 %v206
          %v208 = vpop.xlane.xlu0 %207
          %v209 = vrcp.pop 32.0
          %v210 = vmul.f32 %v208, %v209
          %v211 = vsub.f32 %v203, %v210
          %v212 = vmul.f32 %v211, %v211
          %v213 = vsel %vm205, %v212, 0.0
          %214 = vadd.xlane.f32.xlu0 %v213
          %v215 = vpop.xlane.xlu0 %214
          %v216 = vmul.f32 %v215, %v209
          %v217 = vadd.f32 %v216, 1e-05
          %v218 = vrsqrt.pop %v217
          %v219 = vmul.f32 %v211, %v218
          %v221 = vlaneseq
          %v222 = vshrl.u32 %v221, 7
          %v223 = vsub.s32 0, %v222
          %v224 = vrot.slane %v204, %v223
          %v226 = vmul.f32 %v219, %v224
          %v227 = vpack.c.bf16 %v226, %v226
          %vm228 = vcmask 257024
          %229 = vst.msk [vmem:[#allocation2] sm:$0xf] %vm228, %v227
        $region36: #{flamingo_palm_forward.7} parent=31 // pred_fallthru
          _
        %v230 = vld [vmem:[#allocation2] sm:$0xf]
        %v231 = vld [vmem:[%s196] sm:$0xf]
        %v232 = vld [vmem:[%s196 + $0x4] sm:$0xf]
        %v233 = vld [vmem:[%s196 + $0x8] sm:$0xf]
        %v234 = vld [vmem:[%s196 + $0xc] sm:$0xf]
        %v239 = vunpack.c.l.b16 %v231
        %v240 = vunpack.c.l.b16 %v232
        %v241 = vunpack.c.l.b16 %v233
        %v242 = vunpack.c.l.b16 %v234
        %v243 = vpack.c.b16 %v240, %v239
        %v244 = vpack.c.b16 %v242, %v241
        %vm247 = vcmask 261120
        %v249 = vsel %vm247, %v230, 0
        %251 = vmatprep.subr.bf16.mxu0 0
        %252 = vmatpush1.bf16.msra.mxu0 %v243
        %253 = vmatprep.subr.bf16.mxu0 0
        %254 = vmatpush1.bf16.msra.mxu0 %v244
        %255 = vmatprep.subr.bf16.mxu0 0
        %256 = vmatpush1.bf16.msra.mxu0 0
        %257 = vmatprep.subr.bf16.mxu0 0
        %258 = vmatpush1.bf16.msra.mxu0 0
        %259 = vmatprep.subr.bf16.mxu0 0
        %260 = vmatpush1.bf16.msra.mxu0 0
        %261 = vmatprep.subr.bf16.mxu0 0
        %262 = vmatpush1.bf16.msra.mxu0 0
        %263 = vmatprep.subr.bf16.mxu0 0
        %264 = vmatpush1.bf16.msra.mxu0 0
        %265 = vmatprep.subr.bf16.mxu0 0
        %266 = vmatpush1.bf16.msra.mxu0 0
        %267 = vmatprep.subr.bf16.mxu0 0
        %268 = vmatpush1.bf16.msra.mxu0 0
        %269 = vmatprep.subr.bf16.mxu0 0
        %270 = vmatpush1.bf16.msra.mxu0 0
        %271 = vmatprep.subr.bf16.mxu0 0
        %272 = vmatpush1.bf16.msra.mxu0 0
        %273 = vmatprep.subr.bf16.mxu0 0
        %274 = vmatpush1.bf16.msra.mxu0 0
        %275 = vmatprep.subr.bf16.mxu0 0
        %276 = vmatpush1.bf16.msra.mxu0 0
        %277 = vmatprep.subr.bf16.mxu0 0
        %278 = vmatpush1.bf16.msra.mxu0 0
        %279 = vmatprep.subr.bf16.mxu0 0
        %280 = vmatpush1.bf16.msra.mxu0 0
        %281 = vmatprep.subr.bf16.mxu0 0
        %282 = vmatpush1.bf16.msra.mxu0 0
        %283 = vmatprep.mubr.bf16.mxu0 0
        %284 = vmatmul.mubr.bf16.gmra.mrb[0].mxu0 %v249
        %v285 = vpop.f32.mrb[0].mxu0
        %v286 = vadd.f32 0.0, %v285
        %v287 = vpop.f32.mrb[0].mxu0
        %v288 = vpop.f32.mrb[0].mxu0
        %v289 = vpop.f32.mrb[0].mxu0
        %290 = vdwg.mxu0
        %291 = vst [vmem:[%s188] sm:$0xff] %v286
        %s292 = sand.u32 %s112, 1
        %s293 = scalar_lea.sflag [#allocation4], %s292
        %s294 = sand.u32 %s112, 1
        %s295 = smul.addr %s294, 8
        %s296 = scalar_lea.vmem [#allocation3], %s295
        // Predicated region
        $region37: #{flamingo_palm_forward.7} parent=31 // pred_check
          %p297 = pneg %p122
        $region38: #{flamingo_palm_forward.7} parent=31 // pred_check_branch
          %299 = sbr.rel (%p297) target = $region40
        $region39: #{flamingo_palm_forward.7} parent=31 // pred_region
          %s301 = ssub.s32 128, 128
          %302 = vsyncadd %s293, %s301
          %s303 = sadd.s32 %s22, %s21
          %s304 = smul.addr %s303, 128
          %s305 = scalar_lea.hbm %s3, %s304
          %s307 = sshll.u32 %s296, 4
          %s308 = int_to_ptr.vmem [resolvable:$true] %s307
          %310 = dma.vmem_to_hbm [thread:$0]  %s308, 128, %s305, %s293
        $region40: #{flamingo_palm_forward.7} parent=31 // pred_fallthru
          _
      $region32: #{flamingo_palm_forward.7} parent=5 // pred_fallthru
        _
      %p311 = scmp.le.s32.totalorder 2, %s12
      // Predicated region
      $region41: #{flamingo_palm_forward.7} parent=5 // pred_check
        %p312 = pneg %p311
      $region42: #{flamingo_palm_forward.7} parent=5 // pred_check_branch
        %314 = sbr.rel (%p312) target = $region44
      $region43: #{flamingo_palm_forward.7} parent=5 // pred_region
        %s315 = ssub.s32 %s12, 2
        // Predicated region
        $region45: #{flamingo_palm_forward.7} parent=43 // pred_check
          %p316 = pneg %p128
        $region46: #{flamingo_palm_forward.7} parent=43 // pred_check_branch
          %318 = sbr.rel (%p316) target = $region48
        $region47: #{flamingo_palm_forward.7} parent=43 // pred_region
          %s319 = sand.u32 %s113, 1
          %s320 = scalar_lea.sflag [#allocation4], %s319
          %s321 = sand.u32 %s113, 1
          %s322 = smul.addr %s321, 8
          %s323 = scalar_lea.vmem [#allocation3], %s322
          %324 = dma.done %s320, 128
        $region48: #{flamingo_palm_forward.7} parent=43 // pred_fallthru
          _
      $region44: #{flamingo_palm_forward.7} parent=5 // pred_fallthru
        _
    $region6: #{flamingo_palm_forward.7} parent=1 // loop_footer
      %s16 = sadd.s32 1, %s12
    $region7: #{flamingo_palm_forward.7} parent=1 // loop_footer_branch
      %11 = sbr.rel target = $region3
    $region8: #{flamingo_palm_forward.7} parent=1 // loop_exit
      _
    %325 = vsyncpa [#allocation4], 1
    %s326 = scalar_lea.sflag [#allocation4], 1
    %327 = vsyncpa %s326, 1

// kernel: flamingo_palm_forward.4
$region0: #{flamingo_palm_forward.4}
  #allocation0 [shape = 'u32[]', space=smem, size = 0x4, offset = 0x4, fixed_abs, tag = 'smem constant byte address 0x4 - core index']
  #allocation1 [shape = 'u32[144,128]{1,0:T(1,128)}', space=vmem, size = 0x12000, scoped, tag = 'internal scratch']
  %s0 = inlined_call_operand.vmem [shape: bf16[2,8,32], index: 0, kind: input, shape index: {}, may-alias: {0,11}]
  %s1 = inlined_call_operand.vmem [shape: f32[1,32], index: 1, kind: input, shape index: {}]
  %s2 = inlined_call_operand.vmem [shape: bf16[2,32,16], index: 2, kind: input, shape index: {}]
  %s3 = inlined_call_operand.vmem [shape: bf16[32,16], index: 3, kind: input, shape index: {}]
  %s4 = inlined_call_operand.vmem [shape: bf16[32,16], index: 4, kind: input, shape index: {}]
  %s5 = inlined_call_operand.vmem [shape: bf16[32,128], index: 5, kind: input, shape index: {}]
  %s6 = inlined_call_operand.vmem [shape: bf16[32,128], index: 6, kind: input, shape index: {}]
  %s7 = inlined_call_operand.vmem [shape: bf16[2,16,32], index: 7, kind: input, shape index: {}]
  %s8 = inlined_call_operand.vmem [shape: bf16[128,32], index: 8, kind: input, shape index: {}]
  %s9 = inlined_call_operand.vmem [shape: f32[8,16], index: 9, kind: input, shape index: {}]
  %s10 = inlined_call_operand.vmem [shape: f32[8,16], index: 10, kind: input, shape index: {}]
  %s11 = inlined_call_operand.vmem [shape: bf16[2,8,32], index: 11, kind: output, shape index: {}, may-alias: {0,11}]
  %s12 = sld [smem:[#allocation0]]
  $region77: #{flamingo_palm_forward.4} parent=0
    _
  %s14 = ssub.s32 1, %s12
  %s15 = scalar_select 0, %s14, %s12
  loop: start=0, step=1, limit=4
  $region2: #{flamingo_palm_forward.4} parent=0 // loop_pre_header
    _
  $region3: #{flamingo_palm_forward.4} parent=0 // loop_header
    %s17 = sphi 0, %s21
    %p18 = scmp.ge.s32.totalorder %s17, 4
    %s27 = sphi 0, %s29
    %s30 = sphi 0, %s27
    %s31 = sphi 0, %s30
    %s47 = sphi 0, %s31
    %s51 = sphi 0, %s51
    %s53 = sphi 0, %s51
    %s54 = sphi 0, %s53
    %s68 = sphi 0, %s54
    %s72 = sphi 0, %s72
    %s74 = sphi 0, %s72
    %s75 = sphi 0, %s74
    %s89 = sphi 0, %s75
    %s93 = sphi 0, %s93
    %s95 = sphi 0, %s93
    %s96 = sphi 0, %s95
    %s110 = sphi 0, %s96
    %s114 = sphi 0, %s114
    %s116 = sphi 0, %s114
    %s117 = sphi 0, %s116
    %s131 = sphi 0, %s117
    %s135 = sphi 0, %s135
    %s137 = sphi 0, %s135
    %s138 = sphi 0, %s137
    %s152 = sphi 0, %s138
    %s156 = sphi 0, %s156
    %s158 = sphi 0, %s156
    %s159 = sphi 0, %s158
    %s173 = sphi 0, %s159
    %s177 = sphi 0, %s177
    %s179 = sphi 0, %s177
    %s180 = sphi 0, %s179
    %s194 = sphi 0, %s180
    %s198 = sphi 0, %s198
    %s200 = sphi 0, %s198
    %s201 = sphi 0, %s200
    %s215 = sphi 0, %s201
    %s219 = sphi 0, %s219
    %s221 = sphi 0, %s219
    %s222 = sphi 0, %s221
    %s236 = sphi 0, %s222
    %s240 = sphi 0, %s240
    %s242 = sphi 0, %s240
    %s243 = sphi 0, %s242
    %s257 = sphi 0, %s243
    %s263 = sphi 0, %s265
    %s266 = sphi 0, %s263
    %s267 = sphi 0, %s266
    %s283 = sphi 0, %s267
  $region4: #{flamingo_palm_forward.4} parent=0 // loop_header_branch
    %20 = sbr.rel (%p18) target = $region8
  $region5: #{flamingo_palm_forward.4} parent=0 // loop_body
    %s22 = ssub.s32 %s17, 1
    %s23 = ssub.s32 %s17, 2
    %s24 = sadd.s32 %s17, 1
    %s25 = ssub.s32 %s17, %s24
    %p26 = scmp.eq.s32.totalorder %s25, 0
    %s28 = sadd.s32 %s27, 1
    %s29 = scalar_select %p26, %s27, %s28
    %p32 = pneg %p26
    %p33 = scmp.eq.s32.totalorder %s17, 1
    %p34 = por %p32, %p33
    %p35 = scmp.ne.s32.totalorder %s27, %s30
    %p36 = scmp.eq.s32.totalorder %s17, 0
    %p37 = por %p35, %p36
    %p38 = scmp.ne.s32.totalorder %s27, %s30
    %p39 = scmp.eq.s32.totalorder %s22, 1
    %p40 = por %p38, %p39
    %p41 = scmp.ne.s32.totalorder %s30, %s31
    %p42 = scmp.eq.s32.totalorder %s22, 0
    %p43 = por %p41, %p42
    %p44 = scmp.ne.s32.totalorder %s30, %s31
    %p45 = scmp.eq.s32.totalorder %s23, 1
    %p46 = por %p44, %p45
    %p48 = scmp.ne.s32.totalorder %s31, %s47
    %p49 = scmp.eq.s32.totalorder %s23, 0
    %p50 = por %p48, %p49
    %s52 = sadd.s32 %s51, 1
    %p55 = scmp.eq.s32.totalorder %s17, 1
    %p56 = scmp.ne.s32.totalorder %s51, %s53
    %p57 = scmp.eq.s32.totalorder %s17, 0
    %p58 = por %p56, %p57
    %p59 = scmp.ne.s32.totalorder %s51, %s53
    %p60 = scmp.eq.s32.totalorder %s22, 1
    %p61 = por %p59, %p60
    %p62 = scmp.ne.s32.totalorder %s53, %s54
    %p63 = scmp.eq.s32.totalorder %s22, 0
    %p64 = por %p62, %p63
    %p65 = scmp.ne.s32.totalorder %s53, %s54
    %p66 = scmp.eq.s32.totalorder %s23, 1
    %p67 = por %p65, %p66
    %p69 = scmp.ne.s32.totalorder %s54, %s68
    %p70 = scmp.eq.s32.totalorder %s23, 0
    %p71 = por %p69, %p70
    %s73 = sadd.s32 %s72, 1
    %p76 = scmp.eq.s32.totalorder %s17, 1
    %p77 = scmp.ne.s32.totalorder %s72, %s74
    %p78 = scmp.eq.s32.totalorder %s17, 0
    %p79 = por %p77, %p78
    %p80 = scmp.ne.s32.totalorder %s72, %s74
    %p81 = scmp.eq.s32.totalorder %s22, 1
    %p82 = por %p80, %p81
    %p83 = scmp.ne.s32.totalorder %s74, %s75
    %p84 = scmp.eq.s32.totalorder %s22, 0
    %p85 = por %p83, %p84
    %p86 = scmp.ne.s32.totalorder %s74, %s75
    %p87 = scmp.eq.s32.totalorder %s23, 1
    %p88 = por %p86, %p87
    %p90 = scmp.ne.s32.totalorder %s75, %s89
    %p91 = scmp.eq.s32.totalorder %s23, 0
    %p92 = por %p90, %p91
    %s94 = sadd.s32 %s93, 1
    %p97 = scmp.eq.s32.totalorder %s17, 1
    %p98 = scmp.ne.s32.totalorder %s93, %s95
    %p99 = scmp.eq.s32.totalorder %s17, 0
    %p100 = por %p98, %p99
    %p101 = scmp.ne.s32.totalorder %s93, %s95
    %p102 = scmp.eq.s32.totalorder %s22, 1
    %p103 = por %p101, %p102
    %p104 = scmp.ne.s32.totalorder %s95, %s96
    %p105 = scmp.eq.s32.totalorder %s22, 0
    %p106 = por %p104, %p105
    %p107 = scmp.ne.s32.totalorder %s95, %s96
    %p108 = scmp.eq.s32.totalorder %s23, 1
    %p109 = por %p107, %p108
    %p111 = scmp.ne.s32.totalorder %s96, %s110
    %p112 = scmp.eq.s32.totalorder %s23, 0
    %p113 = por %p111, %p112
    %s115 = sadd.s32 %s114, 1
    %p118 = scmp.eq.s32.totalorder %s17, 1
    %p119 = scmp.ne.s32.totalorder %s114, %s116
    %p120 = scmp.eq.s32.totalorder %s17, 0
    %p121 = por %p119, %p120
    %p122 = scmp.ne.s32.totalorder %s114, %s116
    %p123 = scmp.eq.s32.totalorder %s22, 1
    %p124 = por %p122, %p123
    %p125 = scmp.ne.s32.totalorder %s116, %s117
    %p126 = scmp.eq.s32.totalorder %s22, 0
    %p127 = por %p125, %p126
    %p128 = scmp.ne.s32.totalorder %s116, %s117
    %p129 = scmp.eq.s32.totalorder %s23, 1
    %p130 = por %p128, %p129
    %p132 = scmp.ne.s32.totalorder %s117, %s131
    %p133 = scmp.eq.s32.totalorder %s23, 0
    %p134 = por %p132, %p133
    %s136 = sadd.s32 %s135, 1
    %p139 = scmp.eq.s32.totalorder %s17, 1
    %p140 = scmp.ne.s32.totalorder %s135, %s137
    %p141 = scmp.eq.s32.totalorder %s17, 0
    %p142 = por %p140, %p141
    %p143 = scmp.ne.s32.totalorder %s135, %s137
    %p144 = scmp.eq.s32.totalorder %s22, 1
    %p145 = por %p143, %p144
    %p146 = scmp.ne.s32.totalorder %s137, %s138
    %p147 = scmp.eq.s32.totalorder %s22, 0
    %p148 = por %p146, %p147
    %p149 = scmp.ne.s32.totalorder %s137, %s138
    %p150 = scmp.eq.s32.totalorder %s23, 1
    %p151 = por %p149, %p150
    %p153 = scmp.ne.s32.totalorder %s138, %s152
    %p154 = scmp.eq.s32.totalorder %s23, 0
    %p155 = por %p153, %p154
    %s157 = sadd.s32 %s156, 1
    %p160 = scmp.eq.s32.totalorder %s17, 1
    %p161 = scmp.ne.s32.totalorder %s156, %s158
    %p162 = scmp.eq.s32.totalorder %s17, 0
    %p163 = por %p161, %p162
    %p164 = scmp.ne.s32.totalorder %s156, %s158
    %p165 = scmp.eq.s32.totalorder %s22, 1
    %p166 = por %p164, %p165
    %p167 = scmp.ne.s32.totalorder %s158, %s159
    %p168 = scmp.eq.s32.totalorder %s22, 0
    %p169 = por %p167, %p168
    %p170 = scmp.ne.s32.totalorder %s158, %s159
    %p171 = scmp.eq.s32.totalorder %s23, 1
    %p172 = por %p170, %p171
    %p174 = scmp.ne.s32.totalorder %s159, %s173
    %p175 = scmp.eq.s32.totalorder %s23, 0
    %p176 = por %p174, %p175
    %s178 = sadd.s32 %s177, 1
    %p181 = scmp.eq.s32.totalorder %s17, 1
    %p182 = scmp.ne.s32.totalorder %s177, %s179
    %p183 = scmp.eq.s32.totalorder %s17, 0
    %p184 = por %p182, %p183
    %p185 = scmp.ne.s32.totalorder %s177, %s179
    %p186 = scmp.eq.s32.totalorder %s22, 1
    %p187 = por %p185, %p186
    %p188 = scmp.ne.s32.totalorder %s179, %s180
    %p189 = scmp.eq.s32.totalorder %s22, 0
    %p190 = por %p188, %p189
    %p191 = scmp.ne.s32.totalorder %s179, %s180
    %p192 = scmp.eq.s32.totalorder %s23, 1
    %p193 = por %p191, %p192
    %p195 = scmp.ne.s32.totalorder %s180, %s194
    %p196 = scmp.eq.s32.totalorder %s23, 0
    %p197 = por %p195, %p196
    %s199 = sadd.s32 %s198, 1
    %p202 = scmp.eq.s32.totalorder %s17, 1
    %p203 = scmp.ne.s32.totalorder %s198, %s200
    %p204 = scmp.eq.s32.totalorder %s17, 0
    %p205 = por %p203, %p204
    %p206 = scmp.ne.s32.totalorder %s198, %s200
    %p207 = scmp.eq.s32.totalorder %s22, 1
    %p208 = por %p206, %p207
    %p209 = scmp.ne.s32.totalorder %s200, %s201
    %p210 = scmp.eq.s32.totalorder %s22, 0
    %p211 = por %p209, %p210
    %p212 = scmp.ne.s32.totalorder %s200, %s201
    %p213 = scmp.eq.s32.totalorder %s23, 1
    %p214 = por %p212, %p213
    %p216 = scmp.ne.s32.totalorder %s201, %s215
    %p217 = scmp.eq.s32.totalorder %s23, 0
    %p218 = por %p216, %p217
    %s220 = sadd.s32 %s219, 1
    %p223 = scmp.eq.s32.totalorder %s17, 1
    %p224 = scmp.ne.s32.totalorder %s219, %s221
    %p225 = scmp.eq.s32.totalorder %s17, 0
    %p226 = por %p224, %p225
    %p227 = scmp.ne.s32.totalorder %s219, %s221
    %p228 = scmp.eq.s32.totalorder %s22, 1
    %p229 = por %p227, %p228
    %p230 = scmp.ne.s32.totalorder %s221, %s222
    %p231 = scmp.eq.s32.totalorder %s22, 0
    %p232 = por %p230, %p231
    %p233 = scmp.ne.s32.totalorder %s221, %s222
    %p234 = scmp.eq.s32.totalorder %s23, 1
    %p235 = por %p233, %p234
    %p237 = scmp.ne.s32.totalorder %s222, %s236
    %p238 = scmp.eq.s32.totalorder %s23, 0
    %p239 = por %p237, %p238
    %s241 = sadd.s32 %s240, 1
    %p244 = scmp.eq.s32.totalorder %s17, 1
    %p245 = scmp.ne.s32.totalorder %s240, %s242
    %p246 = scmp.eq.s32.totalorder %s17, 0
    %p247 = por %p245, %p246
    %p248 = scmp.ne.s32.totalorder %s240, %s242
    %p249 = scmp.eq.s32.totalorder %s22, 1
    %p250 = por %p248, %p249
    %p251 = scmp.ne.s32.totalorder %s242, %s243
    %p252 = scmp.eq.s32.totalorder %s22, 0
    %p253 = por %p251, %p252
    %p254 = scmp.ne.s32.totalorder %s242, %s243
    %p255 = scmp.eq.s32.totalorder %s23, 1
    %p256 = por %p254, %p255
    %p258 = scmp.ne.s32.totalorder %s243, %s257
    %p259 = scmp.eq.s32.totalorder %s23, 0
    %p260 = por %p258, %p259
    %s261 = ssub.s32 %s17, %s24
    %p262 = scmp.eq.s32.totalorder %s261, 0
    %s264 = sadd.s32 %s263, 1
    %s265 = scalar_select %p262, %s263, %s264
    %p268 = pneg %p262
    %p269 = scmp.eq.s32.totalorder %s17, 1
    %p270 = por %p268, %p269
    %p271 = scmp.ne.s32.totalorder %s263, %s266
    %p272 = scmp.eq.s32.totalorder %s17, 0
    %p273 = por %p271, %p272
    %p274 = scmp.ne.s32.totalorder %s263, %s266
    %p275 = scmp.eq.s32.totalorder %s22, 1
    %p276 = por %p274, %p275
    %p277 = scmp.ne.s32.totalorder %s266, %s267
    %p278 = scmp.eq.s32.totalorder %s22, 0
    %p279 = por %p277, %p278
    %p280 = scmp.ne.s32.totalorder %s266, %s267
    %p281 = scmp.eq.s32.totalorder %s23, 1
    %p282 = por %p280, %p281
    %p284 = scmp.ne.s32.totalorder %s267, %s283
    %p285 = scmp.eq.s32.totalorder %s23, 0
    %p286 = por %p284, %p285
    %p287 = scmp.le.s32.totalorder 1, %s17
    %p288 = scmp.lt.s32.totalorder %s17, 3
    %p289 = pnand %p287, %p288
    %p290 = pneg %p289
    // Predicated region
    $region9: #{flamingo_palm_forward.4} parent=5 // pred_check
      _
    $region10: #{flamingo_palm_forward.4} parent=5 // pred_check_branch
      %292 = sbr.rel (%p289) target = $region12
    $region11: #{flamingo_palm_forward.4} parent=5 // pred_region
      %s293 = ssub.s32 %s17, 1
      // Predicated region
      $region13: #{flamingo_palm_forward.4} parent=11 // pred_check
        %p294 = pneg %p64
      $region14: #{flamingo_palm_forward.4} parent=11 // pred_check_branch
        %296 = sbr.rel (%p294) target = $region16
      $region15: #{flamingo_palm_forward.4} parent=11 // pred_region
        _
      $region16: #{flamingo_palm_forward.4} parent=11 // pred_fallthru
        _
      // Predicated region
      $region17: #{flamingo_palm_forward.4} parent=11 // pred_check
        %p297 = pneg %p85
      $region18: #{flamingo_palm_forward.4} parent=11 // pred_check_branch
        %299 = sbr.rel (%p297) target = $region20
      $region19: #{flamingo_palm_forward.4} parent=11 // pred_region
        _
      $region20: #{flamingo_palm_forward.4} parent=11 // pred_fallthru
        _
      // Predicated region
      $region21: #{flamingo_palm_forward.4} parent=11 // pred_check
        %p300 = pneg %p106
      $region22: #{flamingo_palm_forward.4} parent=11 // pred_check_branch
        %302 = sbr.rel (%p300) target = $region24
      $region23: #{flamingo_palm_forward.4} parent=11 // pred_region
        _
      $region24: #{flamingo_palm_forward.4} parent=11 // pred_fallthru
        _
      // Predicated region
      $region25: #{flamingo_palm_forward.4} parent=11 // pred_check
        %p303 = pneg %p127
      $region26: #{flamingo_palm_forward.4} parent=11 // pred_check_branch
        %305 = sbr.rel (%p303) target = $region28
      $region27: #{flamingo_palm_forward.4} parent=11 // pred_region
        _
      $region28: #{flamingo_palm_forward.4} parent=11 // pred_fallthru
        _
      // Predicated region
      $region29: #{flamingo_palm_forward.4} parent=11 // pred_check
        %p306 = pneg %p148
      $region30: #{flamingo_palm_forward.4} parent=11 // pred_check_branch
        %308 = sbr.rel (%p306) target = $region32
      $region31: #{flamingo_palm_forward.4} parent=11 // pred_region
        _
      $region32: #{flamingo_palm_forward.4} parent=11 // pred_fallthru
        _
      // Predicated region
      $region33: #{flamingo_palm_forward.4} parent=11 // pred_check
        %p309 = pneg %p169
      $region34: #{flamingo_palm_forward.4} parent=11 // pred_check_branch
        %311 = sbr.rel (%p309) target = $region36
      $region35: #{flamingo_palm_forward.4} parent=11 // pred_region
        _
      $region36: #{flamingo_palm_forward.4} parent=11 // pred_fallthru
        _
      // Predicated region
      $region37: #{flamingo_palm_forward.4} parent=11 // pred_check
        %p312 = pneg %p190
      $region38: #{flamingo_palm_forward.4} parent=11 // pred_check_branch
        %314 = sbr.rel (%p312) target = $region40
      $region39: #{flamingo_palm_forward.4} parent=11 // pred_region
        _
      $region40: #{flamingo_palm_forward.4} parent=11 // pred_fallthru
        _
      // Predicated region
      $region41: #{flamingo_palm_forward.4} parent=11 // pred_check
        %p315 = pneg %p211
      $region42: #{flamingo_palm_forward.4} parent=11 // pred_check_branch
        %317 = sbr.rel (%p315) target = $region44
      $region43: #{flamingo_palm_forward.4} parent=11 // pred_region
        _
      $region44: #{flamingo_palm_forward.4} parent=11 // pred_fallthru
        _
      // Predicated region
      $region45: #{flamingo_palm_forward.4} parent=11 // pred_check
        %p318 = pneg %p232
      $region46: #{flamingo_palm_forward.4} parent=11 // pred_check_branch
        %320 = sbr.rel (%p318) target = $region48
      $region47: #{flamingo_palm_forward.4} parent=11 // pred_region
        _
      $region48: #{flamingo_palm_forward.4} parent=11 // pred_fallthru
        _
      // Predicated region
      $region49: #{flamingo_palm_forward.4} parent=11 // pred_check
        %p321 = pneg %p253
      $region50: #{flamingo_palm_forward.4} parent=11 // pred_check_branch
        %323 = sbr.rel (%p321) target = $region52
      $region51: #{flamingo_palm_forward.4} parent=11 // pred_region
        _
      $region52: #{flamingo_palm_forward.4} parent=11 // pred_fallthru
        _
    $region12: #{flamingo_palm_forward.4} parent=5 // pred_fallthru
      _
    %p324 = scmp.lt.s32.totalorder %s17, 2
    // Predicated region
    $region53: #{flamingo_palm_forward.4} parent=5 // pred_check
      %p325 = pneg %p324
    $region54: #{flamingo_palm_forward.4} parent=5 // pred_check_branch
      %327 = sbr.rel (%p325) target = $region56
    $region55: #{flamingo_palm_forward.4} parent=5 // pred_region
      // Predicated region
      $region57: #{flamingo_palm_forward.4} parent=55 // pred_check
        %p328 = pneg %p37
      $region58: #{flamingo_palm_forward.4} parent=55 // pred_check_branch
        %330 = sbr.rel (%p328) target = $region60
      $region59: #{flamingo_palm_forward.4} parent=55 // pred_region
        %p331 = scmp.lt.s32.totalorder %s17, 1
        %s332 = scalar_select %p331, %s17, 1
        %s333 = smul.addr %s332, 4
        %s334 = scalar_lea.vmem %s0, %s333
      $region60: #{flamingo_palm_forward.4} parent=55 // pred_fallthru
        _
    $region56: #{flamingo_palm_forward.4} parent=5 // pred_fallthru
      _
    %p335 = scmp.le.s32.totalorder 1, %s17
    %p336 = scmp.lt.s32.totalorder %s17, 3
    %p337 = pnand %p335, %p336
    %p338 = pneg %p337
    // Predicated region
    $region61: #{flamingo_palm_forward.4} parent=5 // pred_check
      _
    $region62: #{flamingo_palm_forward.4} parent=5 // pred_check_branch
      %340 = sbr.rel (%p337) target = $region64
    $region63: #{flamingo_palm_forward.4} parent=5 // pred_region
      %s341 = ssub.s32 %s17, 1
      %p342 = scmp.lt.s32.totalorder %s22, 1
      %s343 = scalar_select %p342, %s22, 1
      %s344 = smul.addr %s343, 4
      %s345 = scalar_lea.vmem %s0, %s344
      %p346 = pneg %p43
      %p347 = pneg %p40
      %p348 = pneg %p64
      %p349 = pneg %p61
      %p350 = pneg %p85
      %p351 = pneg %p82
      %p352 = pneg %p106
      %p353 = pneg %p103
      %p354 = pneg %p127
      %p355 = pneg %p124
      %p356 = pneg %p148
      %p357 = pneg %p145
      %p358 = pneg %p169
      %p359 = pneg %p166
      %p360 = pneg %p190
      %p361 = pneg %p187
      %p362 = pneg %p211
      %p363 = pneg %p208
      %p364 = pneg %p232
      %p365 = pneg %p229
      %p366 = pneg %p253
      %p367 = pneg %p250
      %p368 = pneg %p279
      %p369 = pneg %p276
      %p370 = scmp.lt.s32.totalorder %s22, 1
      %s371 = scalar_select %p370, %s22, 1
      %s372 = smul.addr %s371, 4
      %s373 = scalar_lea.vmem %s11, %s372
      %p374 = scmp.lt.s32.totalorder %s22, 1
      %s375 = scalar_select %p374, %s22, 1
      %s376 = smul.addr %s375, 4
      %s377 = scalar_lea.vmem %s0, %s376
      %p378 = scmp.lt.s32.totalorder %s22, 1
      %s379 = scalar_select %p378, %s22, 1
      %s380 = smul.addr %s379, 4
      %s381 = scalar_lea.vmem %s11, %s380
      %v383 = vld [vmem:[%s377] sm:$0xf]
      %v384 = vunpack.c.l.bf16 %v383
      %v385 = vld [vmem:[%s1] sm:$0x1]
      %vm386 = vcmask 261120
      %v387 = vsel %vm386, %v384, 0.0
      %388 = vadd.xlane.f32.xlu0 %v387
      %v389 = vpop.xlane.xlu0 %388
      %v390 = vrcp.pop 32.0
      %v391 = vmul.f32 %v389, %v390
      %v392 = vsub.f32 %v384, %v391
      %v393 = vmul.f32 %v392, %v392
      %v394 = vsel %vm386, %v393, 0.0
      %395 = vadd.xlane.f32.xlu0 %v394
      %v396 = vpop.xlane.xlu0 %395
      %v397 = vmul.f32 %v396, %v390
      %v398 = vadd.f32 %v397, 1e-05
      %v399 = vrsqrt.pop %v398
      %v400 = vmul.f32 %v392, %v399
      %v402 = vlaneseq
      %v403 = vshrl.u32 %v402, 7
      %v404 = vsub.s32 0, %v403
      %v405 = vrot.slane %v385, %v404
      %v407 = vmul.f32 %v400, %v405
      %v408 = vpack.c.bf16 %v407, %v407
      %v409 = vld [vmem:[%s9] sm:$0xff]
      %v410 = vld [vmem:[%s10] sm:$0xff]
      %v411 = vld [vmem:[%s3] sm:$0xf]
      %v412 = vld [vmem:[%s3 + $0x4] sm:$0xf]
      %v413 = vld [vmem:[%s3 + $0x8] sm:$0xf]
      %v414 = vld [vmem:[%s3 + $0xc] sm:$0xf]
      %v419 = vunpack.c.l.b16 %v411
      %v420 = vunpack.c.l.b16 %v412
      %v421 = vunpack.c.l.b16 %v413
      %v422 = vunpack.c.l.b16 %v414
      %v423 = vpack.c.b16 %v420, %v419
      %v424 = vpack.c.b16 %v422, %v421
      %v428 = vsel %vm386, %v408, 0
      %430 = vmatprep.subr.bf16.mxu0 0
      %431 = vmatpush1.bf16.msra.mxu0 %v423
      %432 = vmatprep.subr.bf16.mxu0 0
      %433 = vmatpush1.bf16.msra.mxu0 %v424
      %434 = vmatprep.subr.bf16.mxu0 0
      %435 = vmatpush1.bf16.msra.mxu0 0
      %436 = vmatprep.subr.bf16.mxu0 0
      %437 = vmatpush1.bf16.msra.mxu0 0
      %438 = vmatprep.subr.bf16.mxu0 0
      %439 = vmatpush1.bf16.msra.mxu0 0
      %440 = vmatprep.subr.bf16.mxu0 0
      %441 = vmatpush1.bf16.msra.mxu0 0
      %442 = vmatprep.subr.bf16.mxu0 0
      %443 = vmatpush1.bf16.msra.mxu0 0
      %444 = vmatprep.subr.bf16.mxu0 0
      %445 = vmatpush1.bf16.msra.mxu0 0
      %446 = vmatprep.subr.bf16.mxu0 0
      %447 = vmatpush1.bf16.msra.mxu0 0
      %448 = vmatprep.subr.bf16.mxu0 0
      %449 = vmatpush1.bf16.msra.mxu0 0
      %450 = vmatprep.subr.bf16.mxu0 0
      %451 = vmatpush1.bf16.msra.mxu0 0
      %452 = vmatprep.subr.bf16.mxu0 0
      %453 = vmatpush1.bf16.msra.mxu0 0
      %454 = vmatprep.subr.bf16.mxu0 0
      %455 = vmatpush1.bf16.msra.mxu0 0
      %456 = vmatprep.subr.bf16.mxu0 0
      %457 = vmatpush1.bf16.msra.mxu0 0
      %458 = vmatprep.subr.bf16.mxu0 0
      %459 = vmatpush1.bf16.msra.mxu0 0
      %460 = vmatprep.subr.bf16.mxu0 0
      %461 = vmatpush1.bf16.msra.mxu0 0
      %462 = vmatprep.mubr.bf16.mxu0 0
      %463 = vmatmul.mubr.bf16.gmra.mrb[0].mxu0 %v428
      %v464 = vpop.f32.mrb[0].mxu0
      %v465 = vadd.f32 0.0, %v464
      %v466 = vpop.f32.mrb[0].mxu0
      %v467 = vpop.f32.mrb[0].mxu0
      %v468 = vpop.f32.mrb[0].mxu0
      %469 = vdwg.mxu0
      %v470 = vld [vmem:[%s4] sm:$0xf]
      %v471 = vld [vmem:[%s4 + $0x4] sm:$0xf]
      %v472 = vld [vmem:[%s4 + $0x8] sm:$0xf]
      %v473 = vld [vmem:[%s4 + $0xc] sm:$0xf]
      %v478 = vunpack.c.l.b16 %v470
      %v479 = vunpack.c.l.b16 %v471
      %v480 = vunpack.c.l.b16 %v472
      %v481 = vunpack.c.l.b16 %v473
      %v482 = vpack.c.b16 %v479, %v478
      %v483 = vpack.c.b16 %v481, %v480
      %486 = vmatprep.subr.bf16.mxu0 0
      %487 = vmatpush1.bf16.msra.mxu0 %v482
      %488 = vmatprep.subr.bf16.mxu0 0
      %489 = vmatpush1.bf16.msra.mxu0 %v483
      %490 = vmatprep.subr.bf16.mxu0 0
      %491 = vmatpush1.bf16.msra.mxu0 0
      %492 = vmatprep.subr.bf16.mxu0 0
      %493 = vmatpush1.bf16.msra.mxu0 0
      %494 = vmatprep.subr.bf16.mxu0 0
      %495 = vmatpush1.bf16.msra.mxu0 0
      %496 = vmatprep.subr.bf16.mxu0 0
      %497 = vmatpush1.bf16.msra.mxu0 0
      %498 = vmatprep.subr.bf16.mxu0 0
      %499 = vmatpush1.bf16.msra.mxu0 0
      %500 = vmatprep.subr.bf16.mxu0 0
      %501 = vmatpush1.bf16.msra.mxu0 0
      %502 = vmatprep.subr.bf16.mxu0 0
      %503 = vmatpush1.bf16.msra.mxu0 0
      %504 = vmatprep.subr.bf16.mxu0 0
      %505 = vmatpush1.bf16.msra.mxu0 0
      %506 = vmatprep.subr.bf16.mxu0 0
      %507 = vmatpush1.bf16.msra.mxu0 0
      %508 = vmatprep.subr.bf16.mxu0 0
      %509 = vmatpush1.bf16.msra.mxu0 0
      %510 = vmatprep.subr.bf16.mxu0 0
      %511 = vmatpush1.bf16.msra.mxu0 0
      %512 = vmatprep.subr.bf16.mxu0 0
      %513 = vmatpush1.bf16.msra.mxu0 0
      %514 = vmatprep.subr.bf16.mxu0 0
      %515 = vmatpush1.bf16.msra.mxu0 0
      %516 = vmatprep.subr.bf16.mxu0 0
      %517 = vmatpush1.bf16.msra.mxu0 0
      %518 = vmatprep.mubr.bf16.mxu0 0
      %519 = vmatmul.mubr.bf16.gmra.mrb[0].mxu0 %v428
      %v520 = vpop.f32.mrb[0].mxu0
      %v521 = vadd.f32 0.0, %v520
      %v522 = vpop.f32.mrb[0].mxu0
      %v523 = vpop.f32.mrb[0].mxu0
      %v524 = vpop.f32.mrb[0].mxu0
      %525 = vdwg.mxu0
      %v526 = vmul.f32 %v465, %v409
      %528 = vrot.lane.b32.xlu0 %v465, 120
      %v529 = vpop.permute.xlu0 %528
      %531 = vrot.lane.b32.xlu0 %v465, 8
      %v532 = vpop.permute.xlu0 %531
      %vm534 = vcmask 64512
      %v535 = vsel %vm534, %v529, %v532
      %v536 = vmul.f32 %v535, %v410
      %v537 = vadd.f32 %v526, %v536
      %v538 = vpack.c.bf16 %v537, %v537
      %v539 = vld [vmem:[%s2] sm:$0xf]
      %v540 = vld [vmem:[%s2 + $0x4] sm:$0xf]
      %v541 = vld [vmem:[%s2 + $0x8] sm:$0xf]
      %v542 = vld [vmem:[%s2 + $0xc] sm:$0xf]
      %v547 = vunpack.c.l.b16 %v539
      %v548 = vunpack.c.l.b16 %v540
      %v549 = vunpack.c.l.b16 %v541
      %v550 = vunpack.c.l.b16 %v542
      %v551 = vpack.c.b16 %v548, %v547
      %v552 = vpack.c.b16 %v550, %v549
      %555 = vmatprep.subr.bf16.mxu0 0
      %556 = vmatpush1.bf16.msra.mxu0 %v551
      %557 = vmatprep.subr.bf16.mxu0 0
      %558 = vmatpush1.bf16.msra.mxu0 %v552
      %559 = vmatprep.subr.bf16.mxu0 0
      %560 = vmatpush1.bf16.msra.mxu0 0
      %561 = vmatprep.subr.bf16.mxu0 0
      %562 = vmatpush1.bf16.msra.mxu0 0
      %563 = vmatprep.subr.bf16.mxu0 0
      %564 = vmatpush1.bf16.msra.mxu0 0
      %565 = vmatprep.subr.bf16.mxu0 0
      %566 = vmatpush1.bf16.msra.mxu0 0
      %567 = vmatprep.subr.bf16.mxu0 0
      %568 = vmatpush1.bf16.msra.mxu0 0
      %569 = vmatprep.subr.bf16.mxu0 0
      %570 = vmatpush1.bf16.msra.mxu0 0
      %571 = vmatprep.subr.bf16.mxu0 0
      %572 = vmatpush1.bf16.msra.mxu0 0
      %573 = vmatprep.subr.bf16.mxu0 0
      %574 = vmatpush1.bf16.msra.mxu0 0
      %575 = vmatprep.subr.bf16.mxu0 0
      %576 = vmatpush1.bf16.msra.mxu0 0
      %577 = vmatprep.subr.bf16.mxu0 0
      %578 = vmatpush1.bf16.msra.mxu0 0
      %579 = vmatprep.subr.bf16.mxu0 0
      %580 = vmatpush1.bf16.msra.mxu0 0
      %581 = vmatprep.subr.bf16.mxu0 0
      %582 = vmatpush1.bf16.msra.mxu0 0
      %583 = vmatprep.subr.bf16.mxu0 0
      %584 = vmatpush1.bf16.msra.mxu0 0
      %585 = vmatprep.subr.bf16.mxu0 0
      %586 = vmatpush1.bf16.msra.mxu0 0
      %587 = vmatprep.mubr.bf16.mxu0 0
      %588 = vmatmul.mubr.bf16.gmra.mrb[0].mxu0 %v428
      %v589 = vpop.f32.mrb[0].mxu0
      %v590 = vadd.f32 0.0, %v589
      %v591 = vpop.f32.mrb[0].mxu0
      %v592 = vpop.f32.mrb[0].mxu0
      %v593 = vpop.f32.mrb[0].mxu0
      %594 = vdwg.mxu0
      %v595 = vmul.f32 %v590, %v409
      %597 = vrot.lane.b32.xlu0 %v590, 120
      %v598 = vpop.permute.xlu0 %597
      %600 = vrot.lane.b32.xlu0 %v590, 8
      %v601 = vpop.permute.xlu0 %600
      %v603 = vsel %vm534, %v598, %v601
      %v604 = vmul.f32 %v603, %v410
      %v605 = vadd.f32 %v595, %v604
      %v606 = vmul.f32 %v605, 0.25
      %v607 = vpack.c.bf16 %v606, %v606
      %s608 = scalar_lea.vmem %s2, 16
      %v609 = vld [vmem:[%s608] sm:$0xf]
      %v610 = vld [vmem:[%s608 + $0x4] sm:$0xf]
      %v611 = vld [vmem:[%s608 + $0x8] sm:$0xf]
      %v612 = vld [vmem:[%s608 + $0xc] sm:$0xf]
      %v617 = vunpack.c.l.b16 %v609
      %v618 = vunpack.c.l.b16 %v610
      %v619 = vunpack.c.l.b16 %v611
      %v620 = vunpack.c.l.b16 %v612
      %v621 = vpack.c.b16 %v618, %v617
      %v622 = vpack.c.b16 %v620, %v619
      %625 = vmatprep.subr.bf16.mxu0 0
      %626 = vmatpush1.bf16.msra.mxu0 %v621
      %627 = vmatprep.subr.bf16.mxu0 0
      %628 = vmatpush1.bf16.msra.mxu0 %v622
      %629 = vmatprep.subr.bf16.mxu0 0
      %630 = vmatpush1.bf16.msra.mxu0 0
      %631 = vmatprep.subr.bf16.mxu0 0
      %632 = vmatpush1.bf16.msra.mxu0 0
      %633 = vmatprep.subr.bf16.mxu0 0
      %634 = vmatpush1.bf16.msra.mxu0 0
      %635 = vmatprep.subr.bf16.mxu0 0
      %636 = vmatpush1.bf16.msra.mxu0 0
      %637 = vmatprep.subr.bf16.mxu0 0
      %638 = vmatpush1.bf16.msra.mxu0 0
      %639 = vmatprep.subr.bf16.mxu0 0
      %640 = vmatpush1.bf16.msra.mxu0 0
      %641 = vmatprep.subr.bf16.mxu0 0
      %642 = vmatpush1.bf16.msra.mxu0 0
      %643 = vmatprep.subr.bf16.mxu0 0
      %644 = vmatpush1.bf16.msra.mxu0 0
      %645 = vmatprep.subr.bf16.mxu0 0
      %646 = vmatpush1.bf16.msra.mxu0 0
      %647 = vmatprep.subr.bf16.mxu0 0
      %648 = vmatpush1.bf16.msra.mxu0 0
      %649 = vmatprep.subr.bf16.mxu0 0
      %650 = vmatpush1.bf16.msra.mxu0 0
      %651 = vmatprep.subr.bf16.mxu0 0
      %652 = vmatpush1.bf16.msra.mxu0 0
      %653 = vmatprep.subr.bf16.mxu0 0
      %654 = vmatpush1.bf16.msra.mxu0 0
      %655 = vmatprep.subr.bf16.mxu0 0
      %656 = vmatpush1.bf16.msra.mxu0 0
      %657 = vmatprep.mubr.bf16.mxu0 0
      %658 = vmatmul.mubr.bf16.gmra.mrb[0].mxu0 %v428
      %v659 = vpop.f32.mrb[0].mxu0
      %v660 = vadd.f32 0.0, %v659
      %v661 = vpop.f32.mrb[0].mxu0
      %v662 = vpop.f32.mrb[0].mxu0
      %v663 = vpop.f32.mrb[0].mxu0
      %664 = vdwg.mxu0
      %v665 = vmul.f32 %v660, %v409
      %667 = vrot.lane.b32.xlu0 %v660, 120
      %v668 = vpop.permute.xlu0 %667
      %670 = vrot.lane.b32.xlu0 %v660, 8
      %v671 = vpop.permute.xlu0 %670
      %v673 = vsel %vm534, %v668, %v671
      %v674 = vmul.f32 %v673, %v410
      %v675 = vadd.f32 %v665, %v674
      %v676 = vmul.f32 %v675, 0.25
      %v677 = vpack.c.bf16 %v676, %v676
      %v679 = vrot.slane %v677, 4
      %vm680 = vcmask 1043456
      %v683 = vsel %vm680, %v607, %v679
      %vm684 = vcmask 130048
      %v685 = vsel %vm684, %v683, 0
      %v688 = vsel %vm684, %v538, 0
      %690 = vmatprep.subr.bf16.mxu0 0
      %691 = vmatpush1.bf16.xpose.msra.mxu0 %v688
      %692 = vmatprep.subr.bf16.mxu0 0
      %693 = vmatpush1.bf16.xpose.msra.mxu0 0
      %694 = vmatprep.subr.bf16.mxu0 0
      %695 = vmatpush1.bf16.xpose.msra.mxu0 0
      %696 = vmatprep.subr.bf16.mxu0 0
      %697 = vmatpush1.bf16.xpose.msra.mxu0 0
      %698 = vmatprep.subr.bf16.mxu0 0
      %699 = vmatpush1.bf16.xpose.msra.mxu0 0
      %700 = vmatprep.subr.bf16.mxu0 0
      %701 = vmatpush1.bf16.xpose.msra.mxu0 0
      %702 = vmatprep.subr.bf16.mxu0 0
      %703 = vmatpush1.bf16.xpose.msra.mxu0 0
      %704 = vmatprep.subr.bf16.mxu0 0
      %705 = vmatpush1.bf16.xpose.msra.mxu0 0
      %706 = vmatprep.subr.bf16.mxu0 0
      %707 = vmatpush1.bf16.xpose.msra.mxu0 0
      %708 = vmatprep.subr.bf16.mxu0 0
      %709 = vmatpush1.bf16.xpose.msra.mxu0 0
      %710 = vmatprep.subr.bf16.mxu0 0
      %711 = vmatpush1.bf16.xpose.msra.mxu0 0
      %712 = vmatprep.subr.bf16.mxu0 0
      %713 = vmatpush1.bf16.xpose.msra.mxu0 0
      %714 = vmatprep.subr.bf16.mxu0 0
      %715 = vmatpush1.bf16.xpose.msra.mxu0 0
      %716 = vmatprep.subr.bf16.mxu0 0
      %717 = vmatpush1.bf16.xpose.msra.mxu0 0
      %718 = vmatprep.subr.bf16.mxu0 0
      %719 = vmatpush1.bf16.xpose.msra.mxu0 0
      %720 = vmatprep.subr.bf16.mxu0 0
      %721 = vmatpush1.bf16.xpose.msra.mxu0 0
      %722 = vmatprep.mubr.bf16.mxu0 0
      %723 = vmatmul.mubr.bf16.gmra.mrb[0].mxu0 %v685
      %v724 = vpop.f32.mrb[0].mxu0
      %v725 = vadd.f32 0.0, %v724
      %v726 = vpop.f32.mrb[0].mxu0
      %v727 = vpop.f32.mrb[0].mxu0
      %v728 = vadd.f32 0.0, %v727
      %v729 = vpop.f32.mrb[0].mxu0
      %730 = vdwg.mxu0
      %v731 = vlaneseq
      %v732 = vshrl.u32 %v731, 7
      %v733 = vlaneseq
      %v734 = vand.u32 %v733, 127
      %vm735 = vcmp.gt.s32.totalorder %v734, %v732
      %v736 = vsel %vm735, 1, 0
      %vm737 = vcmp.eq.s32.totalorder %v736, 1
      %v738 = vsel %vm737, -1e+30, %v725
      %v739 = vsel %vm737, -1e+30, %v728
      %v740 = vsel %vm534, %v738, -inf
      %741 = vmax.xlane.f32.xlu0 %v740
      %v742 = vpop.xlane.xlu0 %741
      %v743 = vsel %vm534, %v739, -inf
      %744 = vmax.xlane.f32.xlu0 %v743
      %v745 = vpop.xlane.xlu0 %744
      %v746 = vsub.f32 %v738, %v742
      %v747 = vsub.f32 %v739, %v745
      %v748 = vmul.f32 %v746, 1.442695
      %v749 = vpow.pop %v748
      %v750 = vmul.f32 %v747, 1.442695
      %v751 = vpow.pop %v750
      %v752 = vsel %vm534, %v749, 0.0
      %753 = vadd.xlane.f32.xlu0 %v752
      %v754 = vpop.xlane.xlu0 %753
      %v755 = vsel %vm534, %v751, 0.0
      %756 = vadd.xlane.f32.xlu0 %v755
      %v757 = vpop.xlane.xlu0 %756
      %v758 = vrcp.pop %v754
      %v759 = vrcp.pop %v757
      %v760 = vmul.f32 %v749, %v758
      %v761 = vmul.f32 %v751, %v759
      %v762 = vpack.c.bf16 %v760, %v760
      %v763 = vpack.c.bf16 %v761, %v761
      %v764 = vpack.c.bf16 %v521, %v521
      %v767 = vunpack.c.l.b16 %v762
      %v768 = vunpack.c.l.b16 %v763
      %v769 = vpack.c.b16 %v768, %v767
      %v771 = vsel %vm534, %v769, 0
      %v774 = vsel %vm680, %v764, 0
      %776 = vmatprep.subr.bf16.mxu0 0
      %777 = vmatpush1.bf16.msra.mxu0 %v774
      %778 = vmatprep.subr.bf16.mxu0 0
      %779 = vmatpush1.bf16.msra.mxu0 0
      %780 = vmatprep.subr.bf16.mxu0 0
      %781 = vmatpush1.bf16.msra.mxu0 0
      %782 = vmatprep.subr.bf16.mxu0 0
      %783 = vmatpush1.bf16.msra.mxu0 0
      %784 = vmatprep.subr.bf16.mxu0 0
      %785 = vmatpush1.bf16.msra.mxu0 0
      %786 = vmatprep.subr.bf16.mxu0 0
      %787 = vmatpush1.bf16.msra.mxu0 0
      %788 = vmatprep.subr.bf16.mxu0 0
      %789 = vmatpush1.bf16.msra.mxu0 0
      %790 = vmatprep.subr.bf16.mxu0 0
      %791 = vmatpush1.bf16.msra.mxu0 0
      %792 = vmatprep.subr.bf16.mxu0 0
      %793 = vmatpush1.bf16.msra.mxu0 0
      %794 = vmatprep.subr.bf16.mxu0 0
      %795 = vmatpush1.bf16.msra.mxu0 0
      %796 = vmatprep.subr.bf16.mxu0 0
      %797 = vmatpush1.bf16.msra.mxu0 0
      %798 = vmatprep.subr.bf16.mxu0 0
      %799 = vmatpush1.bf16.msra.mxu0 0
      %800 = vmatprep.subr.bf16.mxu0 0
      %801 = vmatpush1.bf16.msra.mxu0 0
      %802 = vmatprep.subr.bf16.mxu0 0
      %803 = vmatpush1.bf16.msra.mxu0 0
      %804 = vmatprep.subr.bf16.mxu0 0
      %805 = vmatpush1.bf16.msra.mxu0 0
      %806 = vmatprep.subr.bf16.mxu0 0
      %807 = vmatpush1.bf16.msra.mxu0 0
      %808 = vmatprep.mubr.bf16.mxu0 0
      %809 = vmatmul.mubr.bf16.gmra.mrb[0].mxu0 %v771
      %v810 = vpop.f32.mrb[0].mxu0
      %v811 = vadd.f32 0.0, %v810
      %v812 = vpop.f32.mrb[0].mxu0
      %v813 = vpop.f32.mrb[0].mxu0
      %v814 = vadd.f32 0.0, %v813
      %v815 = vpop.f32.mrb[0].mxu0
      %816 = vdwg.mxu0
      %v817 = vpack.c.bf16 %v811, %v811
      %v818 = vld [vmem:[%s7] sm:$0xf]
      %v819 = vld [vmem:[%s7 + $0x4] sm:$0xf]
      %v820 = vpack.c.bf16 %v814, %v814
      %s821 = scalar_lea.vmem %s7, 8
      %v822 = vld [vmem:[%s821] sm:$0xf]
      %v823 = vld [vmem:[%s821 + $0x4] sm:$0xf]
      %v826 = vunpack.c.l.b16 %v822
      %v827 = vunpack.c.l.b16 %v823
      %v828 = vpack.c.b16 %v827, %v826
      %v831 = vsel %vm684, %v820, 0
      %833 = vmatprep.subr.bf16.mxu0 0
      %834 = vmatpush1.bf16.msra.mxu0 %v828
      %835 = vmatprep.subr.bf16.mxu0 0
      %836 = vmatpush1.bf16.msra.mxu0 0
      %837 = vmatprep.subr.bf16.mxu0 0
      %838 = vmatpush1.bf16.msra.mxu0 0
      %839 = vmatprep.subr.bf16.mxu0 0
      %840 = vmatpush1.bf16.msra.mxu0 0
      %841 = vmatprep.subr.bf16.mxu0 0
      %842 = vmatpush1.bf16.msra.mxu0 0
      %843 = vmatprep.subr.bf16.mxu0 0
      %844 = vmatpush1.bf16.msra.mxu0 0
      %845 = vmatprep.subr.bf16.mxu0 0
      %846 = vmatpush1.bf16.msra.mxu0 0
      %847 = vmatprep.subr.bf16.mxu0 0
      %848 = vmatpush1.bf16.msra.mxu0 0
      %849 = vmatprep.subr.bf16.mxu0 0
      %850 = vmatpush1.bf16.msra.mxu0 0
      %851 = vmatprep.subr.bf16.mxu0 0
      %852 = vmatpush1.bf16.msra.mxu0 0
      %853 = vmatprep.subr.bf16.mxu0 0
      %854 = vmatpush1.bf16.msra.mxu0 0
      %855 = vmatprep.subr.bf16.mxu0 0
      %856 = vmatpush1.bf16.msra.mxu0 0
      %857 = vmatprep.subr.bf16.mxu0 0
      %858 = vmatpush1.bf16.msra.mxu0 0
      %859 = vmatprep.subr.bf16.mxu0 0
      %860 = vmatpush1.bf16.msra.mxu0 0
      %861 = vmatprep.subr.bf16.mxu0 0
      %862 = vmatpush1.bf16.msra.mxu0 0
      %863 = vmatprep.subr.bf16.mxu0 0
      %864 = vmatpush1.bf16.msra.mxu0 0
      %865 = vmatprep.mubr.bf16.mxu0 0
      %866 = vmatmul.mubr.bf16.gmra.mrb[0].mxu0 %v831
      %v867 = vpop.f32.mrb[0].mxu0
      %v868 = vadd.f32 0.0, %v867
      %v869 = vpop.f32.mrb[0].mxu0
      %v870 = vpop.f32.mrb[0].mxu0
      %v871 = vpop.f32.mrb[0].mxu0
      %872 = vdwg.mxu0
      %v875 = vunpack.c.l.b16 %v818
      %v876 = vunpack.c.l.b16 %v819
      %v877 = vpack.c.b16 %v876, %v875
      %v880 = vsel %vm684, %v817, 0
      %882 = vmatprep.subr.bf16.mxu0 0
      %883 = vmatpush1.bf16.msra.mxu0 %v877
      %884 = vmatprep.subr.bf16.mxu0 0
      %885 = vmatpush1.bf16.msra.mxu0 0
      %886 = vmatprep.subr.bf16.mxu0 0
      %887 = vmatpush1.bf16.msra.mxu0 0
      %888 = vmatprep.subr.bf16.mxu0 0
      %889 = vmatpush1.bf16.msra.mxu0 0
      %890 = vmatprep.subr.bf16.mxu0 0
      %891 = vmatpush1.bf16.msra.mxu0 0
      %892 = vmatprep.subr.bf16.mxu0 0
      %893 = vmatpush1.bf16.msra.mxu0 0
      %894 = vmatprep.subr.bf16.mxu0 0
      %895 = vmatpush1.bf16.msra.mxu0 0
      %896 = vmatprep.subr.bf16.mxu0 0
      %897 = vmatpush1.bf16.msra.mxu0 0
      %898 = vmatprep.subr.bf16.mxu0 0
      %899 = vmatpush1.bf16.msra.mxu0 0
      %900 = vmatprep.subr.bf16.mxu0 0
      %901 = vmatpush1.bf16.msra.mxu0 0
      %902 = vmatprep.subr.bf16.mxu0 0
      %903 = vmatpush1.bf16.msra.mxu0 0
      %904 = vmatprep.subr.bf16.mxu0 0
      %905 = vmatpush1.bf16.msra.mxu0 0
      %906 = vmatprep.subr.bf16.mxu0 0
      %907 = vmatpush1.bf16.msra.mxu0 0
      %908 = vmatprep.subr.bf16.mxu0 0
      %909 = vmatpush1.bf16.msra.mxu0 0
      %910 = vmatprep.subr.bf16.mxu0 0
      %911 = vmatpush1.bf16.msra.mxu0 0
      %912 = vmatprep.subr.bf16.mxu0 0
      %913 = vmatpush1.bf16.msra.mxu0 0
      %914 = vmatprep.mubr.bf16.mxu0 0
      %915 = vmatmul.mubr.bf16.gmra.mrb[0].mxu0 %v880
      %v916 = vpop.f32.mrb[0].mxu0
      %v917 = vadd.f32 %v868, %v916
      %v918 = vpop.f32.mrb[0].mxu0
      %v919 = vpop.f32.mrb[0].mxu0
      %v920 = vpop.f32.mrb[0].mxu0
      %921 = vdwg.mxu0
      %v922 = vld [vmem:[%s5] sm:$0xf]
      %v923 = vld [vmem:[%s5 + $0x4] sm:$0xf]
      %v924 = vld [vmem:[%s5 + $0x8] sm:$0xf]
      %v925 = vld [vmem:[%s5 + $0xc] sm:$0xf]
      %v930 = vunpack.c.l.b16 %v922
      %v931 = vunpack.c.l.b16 %v923
      %v932 = vunpack.c.l.b16 %v924
      %v933 = vunpack.c.l.b16 %v925
      %v934 = vpack.c.b16 %v931, %v930
      %v935 = vpack.c.b16 %v933, %v932
      %938 = vmatprep.subr.bf16.mxu0 0
      %939 = vmatpush1.bf16.msra.mxu0 %v934
      %940 = vmatprep.subr.bf16.mxu0 0
      %941 = vmatpush1.bf16.msra.mxu0 %v935
      %942 = vmatprep.subr.bf16.mxu0 0
      %943 = vmatpush1.bf16.msra.mxu0 0
      %944 = vmatprep.subr.bf16.mxu0 0
      %945 = vmatpush1.bf16.msra.mxu0 0
      %946 = vmatprep.subr.bf16.mxu0 0
      %947 = vmatpush1.bf16.msra.mxu0 0
      %948 = vmatprep.subr.bf16.mxu0 0
      %949 = vmatpush1.bf16.msra.mxu0 0
      %950 = vmatprep.subr.bf16.mxu0 0
      %951 = vmatpush1.bf16.msra.mxu0 0
      %952 = vmatprep.subr.bf16.mxu0 0
      %953 = vmatpush1.bf16.msra.mxu0 0
      %954 = vmatprep.subr.bf16.mxu0 0
      %955 = vmatpush1.bf16.msra.mxu0 0
      %956 = vmatprep.subr.bf16.mxu0 0
      %957 = vmatpush1.bf16.msra.mxu0 0
      %958 = vmatprep.subr.bf16.mxu0 0
      %959 = vmatpush1.bf16.msra.mxu0 0
      %960 = vmatprep.subr.bf16.mxu0 0
      %961 = vmatpush1.bf16.msra.mxu0 0
      %962 = vmatprep.subr.bf16.mxu0 0
      %963 = vmatpush1.bf16.msra.mxu0 0
      %964 = vmatprep.subr.bf16.mxu0 0
      %965 = vmatpush1.bf16.msra.mxu0 0
      %966 = vmatprep.subr.bf16.mxu0 0
      %967 = vmatpush1.bf16.msra.mxu0 0
      %968 = vmatprep.subr.bf16.mxu0 0
      %969 = vmatpush1.bf16.msra.mxu0 0
      %970 = vmatprep.mubr.bf16.mxu0 0
      %971 = vmatmul.mubr.bf16.gmra.mrb[0].mxu0 %v428
      %v972 = vpop.f32.mrb[0].mxu0
      %v973 = vadd.f32 0.0, %v972
      %v974 = vpop.f32.mrb[0].mxu0
      %v975 = vpop.f32.mrb[0].mxu0
      %v976 = vpop.f32.mrb[0].mxu0
      %977 = vdwg.mxu0
      %v978 = vld [vmem:[%s6] sm:$0xf]
      %v979 = vld [vmem:[%s6 + $0x4] sm:$0xf]
      %v980 = vld [vmem:[%s6 + $0x8] sm:$0xf]
      %v981 = vld [vmem:[%s6 + $0xc] sm:$0xf]
      %v986 = vunpack.c.l.b16 %v978
      %v987 = vunpack.c.l.b16 %v979
      %v988 = vunpack.c.l.b16 %v980
      %v989 = vunpack.c.l.b16 %v981
      %v990 = vpack.c.b16 %v987, %v986
      %v991 = vpack.c.b16 %v989, %v988
      %994 = vmatprep.subr.bf16.mxu0 0
      %995 = vmatpush1.bf16.msra.mxu0 %v990
      %996 = vmatprep.subr.bf16.mxu0 0
      %997 = vmatpush1.bf16.msra.mxu0 %v991
      %998 = vmatprep.subr.bf16.mxu0 0
      %999 = vmatpush1.bf16.msra.mxu0 0
      %1000 = vmatprep.subr.bf16.mxu0 0
      %1001 = vmatpush1.bf16.msra.mxu0 0
      %1002 = vmatprep.subr.bf16.mxu0 0
      %1003 = vmatpush1.bf16.msra.mxu0 0
      %1004 = vmatprep.subr.bf16.mxu0 0
      %1005 = vmatpush1.bf16.msra.mxu0 0
      %1006 = vmatprep.subr.bf16.mxu0 0
      %1007 = vmatpush1.bf16.msra.mxu0 0
      %1008 = vmatprep.subr.bf16.mxu0 0
      %1009 = vmatpush1.bf16.msra.mxu0 0
      %1010 = vmatprep.subr.bf16.mxu0 0
      %1011 = vmatpush1.bf16.msra.mxu0 0
      %1012 = vmatprep.subr.bf16.mxu0 0
      %1013 = vmatpush1.bf16.msra.mxu0 0
      %1014 = vmatprep.subr.bf16.mxu0 0
      %1015 = vmatpush1.bf16.msra.mxu0 0
      %1016 = vmatprep.subr.bf16.mxu0 0
      %1017 = vmatpush1.bf16.msra.mxu0 0
      %1018 = vmatprep.subr.bf16.mxu0 0
      %1019 = vmatpush1.bf16.msra.mxu0 0
      %1020 = vmatprep.subr.bf16.mxu0 0
      %1021 = vmatpush1.bf16.msra.mxu0 0
      %1022 = vmatprep.subr.bf16.mxu0 0
      %1023 = vmatpush1.bf16.msra.mxu0 0
      %1024 = vmatprep.subr.bf16.mxu0 0
      %1025 = vmatpush1.bf16.msra.mxu0 0
      %1026 = vmatprep.mubr.bf16.mxu0 0
      %1027 = vmatmul.mubr.bf16.gmra.mrb[0].mxu0 %v428
      %v1028 = vpop.f32.mrb[0].mxu0
      %v1029 = vadd.f32 0.0, %v1028
      %v1030 = vpop.f32.mrb[0].mxu0
      %v1031 = vpop.f32.mrb[0].mxu0
      %v1032 = vpop.f32.mrb[0].mxu0
      %1033 = vdwg.mxu0
      %v1034 = vxor.u32 %v1029, 2147483648
      %v1035 = vmul.f32 %v1034, 1.442695
      %v1036 = vpow.pop %v1035
      %v1037 = vadd.f32 %v1036, 1.0
      %v1038 = vrcp.pop %v1037
      %v1039 = vmul.f32 1.0, %v1038
      %v1040 = vmul.f32 %v1029, %v1039
      %v1041 = vmul.f32 %v1040, %v973
      %v1042 = vpack.c.bf16 %v1041, %v1041
      %v1043 = vld [vmem:[%s8] sm:$0xf]
      %v1044 = vld [vmem:[%s8 + $0x4] sm:$0xf]
      %v1045 = vld [vmem:[%s8 + $0x8] sm:$0xf]
      %v1046 = vld [vmem:[%s8 + $0xc] sm:$0xf]
      %v1047 = vld [vmem:[%s8 + $0x10] sm:$0xf]
      %v1048 = vld [vmem:[%s8 + $0x14] sm:$0xf]
      %v1049 = vld [vmem:[%s8 + $0x18] sm:$0xf]
      %v1050 = vld [vmem:[%s8 + $0x1c] sm:$0xf]
      %v1051 = vld [vmem:[%s8 + $0x20] sm:$0xf]
      %v1052 = vld [vmem:[%s8 + $0x24] sm:$0xf]
      %v1053 = vld [vmem:[%s8 + $0x28] sm:$0xf]
      %v1054 = vld [vmem:[%s8 + $0x2c] sm:$0xf]
      %v1055 = vld [vmem:[%s8 + $0x30] sm:$0xf]
      %v1056 = vld [vmem:[%s8 + $0x34] sm:$0xf]
      %v1057 = vld [vmem:[%s8 + $0x38] sm:$0xf]
      %v1058 = vld [vmem:[%s8 + $0x3c] sm:$0xf]
      %v1075 = vunpack.c.l.b16 %v1043
      %v1076 = vunpack.c.l.b16 %v1044
      %v1077 = vunpack.c.l.b16 %v1045
      %v1078 = vunpack.c.l.b16 %v1046
      %v1079 = vunpack.c.l.b16 %v1047
      %v1080 = vunpack.c.l.b16 %v1048
      %v1081 = vunpack.c.l.b16 %v1049
      %v1082 = vunpack.c.l.b16 %v1050
      %v1083 = vunpack.c.l.b16 %v1051
      %v1084 = vunpack.c.l.b16 %v1052
      %v1085 = vunpack.c.l.b16 %v1053
      %v1086 = vunpack.c.l.b16 %v1054
      %v1087 = vunpack.c.l.b16 %v1055
      %v1088 = vunpack.c.l.b16 %v1056
      %v1089 = vunpack.c.l.b16 %v1057
      %v1090 = vunpack.c.l.b16 %v1058
      %v1091 = vpack.c.b16 %v1076, %v1075
      %v1092 = vpack.c.b16 %v1078, %v1077
      %v1093 = vpack.c.b16 %v1080, %v1079
      %v1094 = vpack.c.b16 %v1082, %v1081
      %v1095 = vpack.c.b16 %v1084, %v1083
      %v1096 = vpack.c.b16 %v1086, %v1085
      %v1097 = vpack.c.b16 %v1088, %v1087
      %v1098 = vpack.c.b16 %v1090, %v1089
      %1107 = vmatprep.subr.bf16.mxu0 0
      %1108 = vmatpush1.bf16.msra.mxu0 %v1091
      %1109 = vmatprep.subr.bf16.mxu0 0
      %1110 = vmatpush1.bf16.msra.mxu0 %v1092
      %1111 = vmatprep.subr.bf16.mxu0 0
      %1112 = vmatpush1.bf16.msra.mxu0 %v1093
      %1113 = vmatprep.subr.bf16.mxu0 0
      %1114 = vmatpush1.bf16.msra.mxu0 %v1094
      %1115 = vmatprep.subr.bf16.mxu0 0
      %1116 = vmatpush1.bf16.msra.mxu0 %v1095
      %1117 = vmatprep.subr.bf16.mxu0 0
      %1118 = vmatpush1.bf16.msra.mxu0 %v1096
      %1119 = vmatprep.subr.bf16.mxu0 0
      %1120 = vmatpush1.bf16.msra.mxu0 %v1097
      %1121 = vmatprep.subr.bf16.mxu0 0
      %1122 = vmatpush1.bf16.msra.mxu0 %v1098
      %1123 = vmatprep.subr.bf16.mxu0 0
      %1124 = vmatpush1.bf16.msra.mxu0 0
      %1125 = vmatprep.subr.bf16.mxu0 0
      %1126 = vmatpush1.bf16.msra.mxu0 0
      %1127 = vmatprep.subr.bf16.mxu0 0
      %1128 = vmatpush1.bf16.msra.mxu0 0
      %1129 = vmatprep.subr.bf16.mxu0 0
      %1130 = vmatpush1.bf16.msra.mxu0 0
      %1131 = vmatprep.subr.bf16.mxu0 0
      %1132 = vmatpush1.bf16.msra.mxu0 0
      %1133 = vmatprep.subr.bf16.mxu0 0
      %1134 = vmatpush1.bf16.msra.mxu0 0
      %1135 = vmatprep.subr.bf16.mxu0 0
      %1136 = vmatpush1.bf16.msra.mxu0 0
      %1137 = vmatprep.subr.bf16.mxu0 0
      %1138 = vmatpush1.bf16.msra.mxu0 0
      %1139 = vmatprep.mubr.bf16.mxu0 0
      %1140 = vmatmul.mubr.bf16.gmra.mrb[0].mxu0 %v1042
      %v1141 = vpop.f32.mrb[0].mxu0
      %v1142 = vadd.f32 0.0, %v1141
      %v1143 = vpop.f32.mrb[0].mxu0
      %v1144 = vpop.f32.mrb[0].mxu0
      %v1145 = vpop.f32.mrb[0].mxu0
      %1146 = vdwg.mxu0
      %v1147 = vadd.f32 %v917, %v1142
      %v1148 = vadd.f32 %v1147, %v384
      %v1149 = vpack.c.bf16 %v1148, %v1148
      %vm1150 = vcmask 257024
      %1151 = vst.msk [vmem:[%s381] sm:$0xf] %vm1150, %v1149
      %p1152 = scmp.lt.s32.totalorder %s22, 1
      %s1153 = scalar_select %p1152, %s22, 1
      %s1154 = smul.addr %s1153, 4
      %s1155 = scalar_lea.vmem %s11, %s1154
      // Predicated region
      $region65: #{flamingo_palm_forward.4} parent=63 // pred_check
        %p1156 = pneg %p276
      $region66: #{flamingo_palm_forward.4} parent=63 // pred_check_branch
        %1158 = sbr.rel (%p1156) target = $region68
      $region67: #{flamingo_palm_forward.4} parent=63 // pred_region
        _
      $region68: #{flamingo_palm_forward.4} parent=63 // pred_fallthru
        _
    $region64: #{flamingo_palm_forward.4} parent=5 // pred_fallthru
      _
    %p1159 = scmp.le.s32.totalorder 2, %s17
    // Predicated region
    $region69: #{flamingo_palm_forward.4} parent=5 // pred_check
      %p1160 = pneg %p1159
    $region70: #{flamingo_palm_forward.4} parent=5 // pred_check_branch
      %1162 = sbr.rel (%p1160) target = $region72
    $region71: #{flamingo_palm_forward.4} parent=5 // pred_region
      %s1163 = ssub.s32 %s17, 2
      // Predicated region
      $region73: #{flamingo_palm_forward.4} parent=71 // pred_check
        %p1164 = pneg %p282
      $region74: #{flamingo_palm_forward.4} parent=71 // pred_check_branch
        %1166 = sbr.rel (%p1164) target = $region76
      $region75: #{flamingo_palm_forward.4} parent=71 // pred_region
        %p1167 = scmp.lt.s32.totalorder %s23, 1
        %s1168 = scalar_select %p1167, %s23, 1
        %s1169 = smul.addr %s1168, 4
        %s1170 = scalar_lea.vmem %s11, %s1169
      $region76: #{flamingo_palm_forward.4} parent=71 // pred_fallthru
        _
    $region72: #{flamingo_palm_forward.4} parent=5 // pred_fallthru
      _
  $region6: #{flamingo_palm_forward.4} parent=0 // loop_footer
    %s21 = sadd.s32 1, %s17
  $region7: #{flamingo_palm_forward.4} parent=0 // loop_footer_branch
    %16 = sbr.rel target = $region3
  $region8: #{flamingo_palm_forward.4} parent=0 // loop_exit
    _

</llo_original>
